<compile_context>
chip_gen: v7x
topology: tpu7x:2x2x1
jax: 0.10.0
libtpu: 0.0.40
codegen_flags: <defaults>
</compile_context>

<pallas_src>
import functools

import jax
import jax.numpy as jnp
from jax.experimental import pallas as pl
from jax.experimental.pallas import tpu as pltpu


def _round_up(x, m):
    return (x + m - 1) // m * m


def _attention_kernel(f1_ref, f2_ref, f3_ref, w1a_ref, w1b_ref, w1c_ref,
                      b1_ref, w2_ref, b2_ref, att_ref, fused_ref,
                      *, scale, approx_recip):
    """One batch tile per grid step.

    attention_mlp : h = relu(f1@W1a + f2@W1b + f3@W1c + b1)  (split-K form of
                    the original Linear(3*dim -> hidden); no packed copy).
    fc_att        : logits = (h@W2 + b2) * dim**-0.5 ; att = softmax(logits).
    fused         : fused  = f1*att[:,0] + f2*att[:,1] + f3*att[:,2].
    """
    # --- MLP hidden (f32 accumulation on the MXU) ----------------------------
    h = jnp.dot(f1_ref[...], w1a_ref[...], preferred_element_type=jnp.float32)
    h = h + jnp.dot(f2_ref[...], w1b_ref[...], preferred_element_type=jnp.float32)
    h = h + jnp.dot(f3_ref[...], w1c_ref[...], preferred_element_type=jnp.float32)
    h = jnp.maximum(h + b1_ref[...], 0.0)

    # --- fc_att + scale + softmax (all f32) -----------------------------------
    logits = (jnp.dot(h, w2_ref[...], preferred_element_type=jnp.float32)
              + b2_ref[...]) * scale
    m = jnp.max(logits, axis=1, keepdims=True)
    e = jnp.exp(logits - m)
    # Exact reciprocal on the f32 path (1e-5 tolerance); EUP approx path on the
    # bf16 storage path where the tolerance is looser anyway.
    inv = pl.reciprocal(jnp.sum(e, axis=1, keepdims=True), approx=approx_recip)
    att = e * inv                                            # [tile_b, 3] f32
    att_ref[...] = att

    # --- fused feature: re-read branch tiles from VMEM refs (keeps live
    #     ranges short across the MXU work); f32 VPU math even on the bf16
    #     storage path (v5e VPU has no bf16) --------------------------------
    fused = (f1_ref[...].astype(jnp.float32) * att[:, 0:1]
             + f2_ref[...].astype(jnp.float32) * att[:, 1:2]
             + f3_ref[...].astype(jnp.float32) * att[:, 2:3])
    fused_ref[...] = fused.astype(fused_ref.dtype)


def attention_forward(f1, f2, f3, w1_t, b1, w2_t, b2, *,
                      tile_b=None, use_bf16=False):
    """GLoMo `Attention.forward` (inference: dropout == identity).

    w1_t: [3*dim, hidden] (Linear weight already transposed to in x out),
    w2_t: [hidden, 3].  Returns (attention [B, 3, 1] f32, fused_feat [B, dim]
    in the feature storage dtype).
    """
    B, dim = f1.shape
    hidden = w1_t.shape[1]
    scale = float(dim) ** (-0.5)

    dim_p = _round_up(dim, 128)
    hidden_p = _round_up(hidden, 128)

    feat_dtype = jnp.bfloat16 if use_bf16 else jnp.float32
    itemsize = 2 if use_bf16 else 4

    # --- generation-aware VMEM budget (v5e/v6e: 128 MiB, v7x: 64 MiB/TC) -----
    try:
        info = pltpu.get_tpu_info()
        vmem_cap = int(getattr(info, "vmem_capacity_bytes", 64 * 1024 * 1024))
    except Exception:
        vmem_cap = 64 * 1024 * 1024          # conservative (v7x per-TC)
    vmem_limit = min(vmem_cap * 3 // 4, 96 * 1024 * 1024)

    # Deeper feature buffering only where there is plenty of VMEM (v5e/v6e).
    feat_bufs = 3 if vmem_cap >= 96 * 1024 * 1024 else 2

    # --- derive tile_b from the VMEM budget -----------------------------------
    if tile_b is None:
        per_row = (feat_bufs * 3 * dim_p * itemsize       # f1/f2/f3 streams
                   + 2 * dim_p * itemsize                 # fused output
                   + 2 * 128 * 4)                         # att output (lane pad)
        # Budget resident params at 2 buffers even though Buffered(1) is
        # requested, so the fallback to default buffering still fits.
        resident = 2 * (3 * dim_p * hidden_p * itemsize   # W1 slabs
                        + hidden_p * 4                    # b1
                        + hidden_p * 128 * itemsize       # W2 (3 -> 128 lanes)
                        + 128 * 4)                        # b2
        budget = int(vmem_limit * 0.8)
        if budget - resident < 8 * per_row:
            raise ValueError(
                "Attention MLP parameters do not fit the VMEM budget "
                f"(resident={resident} B, budget={budget} B); reduce dim/hidden.")
        tile_b = min(4096, ((budget - resident) // per_row) // 8 * 8)

    rows = _round_up(B, 8)
    tile_b = max(8, min(tile_b, rows))
    if rows >= 16:
        # Keep >= 2 grid steps so both v7x TensorCores get work (an extra grid
        # step is ~0.35 us, negligible on v5e/v6e).
        tile_b = min(tile_b, _round_up(pl.cdiv(rows, 2), 8))
    B_p = _round_up(B, tile_b)
    num_tiles = B_p // tile_b

    # --- pad inputs / parameters (exact: zeros only) --------------------------
    def pad_feat(f):
        return jnp.pad(f, ((0, B_p - B), (0, dim_p - dim))).astype(feat_dtype)

    f1p, f2p, f3p = pad_feat(f1), pad_feat(f2), pad_feat(f3)

    def w1_slab(k):
        return jnp.pad(w1_t[k * dim:(k + 1) * dim, :],
                       ((0, dim_p - dim), (0, hidden_p - hidden))).astype(feat_dtype)

    w1a, w1b, w1c = w1_slab(0), w1_slab(1), w1_slab(2)
    b1_p = jnp.pad(b1.reshape(1, hidden),
                   ((0, 0), (0, hidden_p - hidden))).astype(jnp.float32)
    w2_p = jnp.pad(w2_t, ((0, hidden_p - hidden), (0, 0))).astype(feat_dtype)
    b2_p = b2.reshape(1, 3).astype(jnp.float32)

    kernel = functools.partial(_attention_kernel, scale=scale,
                               approx_recip=use_bf16)

    # Advisory cost estimate for the XLA scheduler.
    flops = (2 * B_p * 3 * dim_p * hidden_p + 2 * B_p * hidden_p * 3
             + 8 * B_p * dim_p)
    bytes_accessed = (itemsize * B_p * 4 * dim_p + 4 * B_p * 3
                      + itemsize * (3 * dim_p * hidden_p + hidden_p * 3)
                      + 4 * (hidden_p + 3))
    cost = pl.CostEstimate(flops=int(flops), transcendentals=int(3 * B_p),
                           bytes_accessed=int(bytes_accessed))

    def build(use_pipeline_mode):
        def resident_spec(shape):
            idx = lambda i: (0,) * len(shape)
            if use_pipeline_mode:
                # Constant index_map: single-buffer to reclaim VMEM for tiles.
                return pl.BlockSpec(shape, idx, pipeline_mode=pl.Buffered(1))
            return pl.BlockSpec(shape, idx)

        def stream_spec():
            idx = lambda i: (i, 0)
            if use_pipeline_mode and feat_bufs != 2:
                return pl.BlockSpec((tile_b, dim_p), idx,
                                    pipeline_mode=pl.Buffered(feat_bufs))
            return pl.BlockSpec((tile_b, dim_p), idx)

        return pl.pallas_call(
            kernel,
            out_shape=(
                jax.ShapeDtypeStruct((B_p, 3), jnp.float32),
                jax.ShapeDtypeStruct((B_p, dim_p), feat_dtype),
            ),
            grid=(num_tiles,),
            in_specs=[
                stream_spec(), stream_spec(), stream_spec(),       # f1, f2, f3
                resident_spec((dim_p, hidden_p)),                  # W1a
                resident_spec((dim_p, hidden_p)),                  # W1b
                resident_spec((dim_p, hidden_p)),                  # W1c
                resident_spec((1, hidden_p)),                      # b1
                resident_spec((hidden_p, 3)),                      # W2
                resident_spec((1, 3)),                             # b2
            ],
            out_specs=(
                pl.BlockSpec((tile_b, 3), lambda i: (i, 0)),       # attention
                pl.BlockSpec((tile_b, dim_p), lambda i: (i, 0)),   # fused feat
            ),
            compiler_params=pltpu.CompilerParams(
                dimension_semantics=("parallel",),
                vmem_limit_bytes=vmem_limit),
            cost_estimate=cost,
        )

    args = (f1p, f2p, f3p, w1a, w1b, w1c, b1_p, w2_p, b2_p)
    try:
        att, fused = build(True)(*args)
    except Exception:
        # Fallback for jax versions without BlockSpec(pipeline_mode=...).
        att, fused = build(False)(*args)

    # Strip padding; match torch: attention keeps a trailing singleton.
    return att[:B, :, None], fused[:B, :dim]


def _reference(f1, f2, f3, w1_t, b1, w2_t, b2):
    dim = f1.shape[1]
    scale = float(dim) ** (-0.5)
    x = jnp.concatenate([f1, f2, f3], axis=1)
    h = jnp.maximum(x @ w1_t + b1, 0.0)
    logits = (h @ w2_t + b2)[:, :, None] * scale
    att = jax.nn.softmax(logits, axis=1)
    stacked = jnp.stack([f1, f2, f3], axis=2)              # [B, dim, 3]
    fused = jnp.matmul(stacked, att)[:, :, 0]
    return att, fused


if __name__ == "__main__":
    B, dim, hidden = 2, 32, 32

    key = jax.random.PRNGKey(0)
    k1, k2, k3, kw1, kb1, kw2, kb2 = jax.random.split(key, 7)

    f1 = jax.random.normal(k1, (B, dim), dtype=jnp.float32)
    f2 = jax.random.normal(k2, (B, dim), dtype=jnp.float32)
    f3 = jax.random.normal(k3, (B, dim), dtype=jnp.float32)

    # Deterministic parameter init (PyTorch-Linear-like uniform bounds),
    # stored already transposed to [in_features, out_features].
    bound1 = 1.0 / (3 * dim) ** 0.5
    w1_t = jax.random.uniform(kw1, (3 * dim, hidden), jnp.float32, -bound1, bound1)
    b1 = jax.random.uniform(kb1, (hidden,), jnp.float32, -bound1, bound1)
    bound2 = 1.0 / hidden ** 0.5
    w2_t = jax.random.uniform(kw2, (hidden, 3), jnp.float32, -bound2, bound2)
    b2 = jax.random.uniform(kb2, (3,), jnp.float32, -bound2, bound2)

    att_ref, fused_ref = _reference(f1, f2, f3, w1_t, b1, w2_t, b2)

    # --- f32 path: exact (1e-5) ------------------------------------------------
    att, fused = attention_forward(f1, f2, f3, w1_t, b1, w2_t, b2)
    jax.block_until_ready((att, fused))
    assert att.shape == (B, 3, 1) and fused.shape == (B, dim)
    assert jnp.allclose(att, att_ref, atol=1e-5), "attention mismatch (f32)"
    assert jnp.allclose(fused, fused_ref, atol=1e-5), "fused feature mismatch (f32)"

    # --- bf16 storage path: halves HBM bytes on v6e/v7x (f32 accumulation) ----
    att_h, fused_h = attention_forward(f1, f2, f3, w1_t, b1, w2_t, b2,
                                       use_bf16=True)
    jax.block_until_ready((att_h, fused_h))
    assert jnp.allclose(att_h, att_ref, atol=5e-2), "attention mismatch (bf16)"
    assert jnp.allclose(jnp.asarray(fused_h, jnp.float32), fused_ref,
                        atol=5e-2), "fused feature mismatch (bf16)"

    # TODO(synk): att is stored as a narrow [tile_b, 3] block (masked vst);
    # negligible (~1% of output bytes) but could be written transposed
    # lane-dense if it ever shows up in the bundle on v5e.
    print("KERNEL_OK")
</pallas_src>

<mosaic_0001>
module attributes {stable_mosaic.version = 11 : i64} {
  func.func @_attention_kernel(%arg0: i32, %arg1: memref<8x128xf32, #tpu.memory_space<vmem>>, %arg2: memref<8x128xf32, #tpu.memory_space<vmem>>, %arg3: memref<8x128xf32, #tpu.memory_space<vmem>>, %arg4: memref<128x128xf32, #tpu.memory_space<vmem>>, %arg5: memref<128x128xf32, #tpu.memory_space<vmem>>, %arg6: memref<128x128xf32, #tpu.memory_space<vmem>>, %arg7: memref<1x128xf32, #tpu.memory_space<vmem>>, %arg8: memref<128x3xf32, #tpu.memory_space<vmem>>, %arg9: memref<1x3xf32, #tpu.memory_space<vmem>>, %arg10: memref<8x3xf32, #tpu.memory_space<vmem>>, %arg11: memref<8x128xf32, #tpu.memory_space<vmem>>) attributes {dimension_semantics = [#tpu.dimension_semantics<parallel>], iteration_bounds = array<i64: 1>, scalar_prefetch = 0 : i64, scratch_operands = 0 : i64, tpu.core_type = #tpu.core_type<tc>, window_params = [{transform_indices = @transform_0, window_bounds = array<i64: 8, 128>}, {transform_indices = @transform_1, window_bounds = array<i64: 8, 128>}, {transform_indices = @transform_2, window_bounds = array<i64: 8, 128>}, {pipeline_mode = #tpu.pipeline_mode<synchronous>, transform_indices = @transform_3, window_bounds = array<i64: 128, 128>}, {pipeline_mode = #tpu.pipeline_mode<synchronous>, transform_indices = @transform_4, window_bounds = array<i64: 128, 128>}, {pipeline_mode = #tpu.pipeline_mode<synchronous>, transform_indices = @transform_5, window_bounds = array<i64: 128, 128>}, {pipeline_mode = #tpu.pipeline_mode<synchronous>, transform_indices = @transform_6, window_bounds = array<i64: 1, 128>}, {pipeline_mode = #tpu.pipeline_mode<synchronous>, transform_indices = @transform_7, window_bounds = array<i64: 128, 3>}, {pipeline_mode = #tpu.pipeline_mode<synchronous>, transform_indices = @transform_8, window_bounds = array<i64: 1, 3>}, {transform_indices = @transform_9, window_bounds = array<i64: 8, 3>}, {transform_indices = @transform_10, window_bounds = array<i64: 8, 128>}]} {
    %c0 = arith.constant 0 : index
    %c0_0 = arith.constant 0 : index
    %0 = vector.load %arg1[%c0, %c0_0] : memref<8x128xf32, #tpu.memory_space<vmem>>, vector<8x128xf32>
    %c0_1 = arith.constant 0 : index
    %c0_2 = arith.constant 0 : index
    %1 = vector.load %arg4[%c0_1, %c0_2] : memref<128x128xf32, #tpu.memory_space<vmem>>, vector<128x128xf32>
    %cst = arith.constant dense<0.000000e+00> : vector<8x128xf32>
    %2 = tpu.matmul %0, %1, %cst {dimension_numbers = #tpu.dot_dimension_numbers<[1], [0], [0], [1], [0, 0, 1, 1], [], []>} : vector<8x128xf32>, vector<128x128xf32>, vector<8x128xf32> -> vector<8x128xf32>
    %c0_3 = arith.constant 0 : index
    %c0_4 = arith.constant 0 : index
    %3 = vector.load %arg2[%c0_3, %c0_4] : memref<8x128xf32, #tpu.memory_space<vmem>>, vector<8x128xf32>
    %c0_5 = arith.constant 0 : index
    %c0_6 = arith.constant 0 : index
    %4 = vector.load %arg5[%c0_5, %c0_6] : memref<128x128xf32, #tpu.memory_space<vmem>>, vector<128x128xf32>
    %cst_7 = arith.constant dense<0.000000e+00> : vector<8x128xf32>
    %5 = tpu.matmul %3, %4, %cst_7 {dimension_numbers = #tpu.dot_dimension_numbers<[1], [0], [0], [1], [0, 0, 1, 1], [], []>} : vector<8x128xf32>, vector<128x128xf32>, vector<8x128xf32> -> vector<8x128xf32>
    %6 = arith.addf %2, %5 : vector<8x128xf32>
    %c0_8 = arith.constant 0 : index
    %c0_9 = arith.constant 0 : index
    %7 = vector.load %arg3[%c0_8, %c0_9] : memref<8x128xf32, #tpu.memory_space<vmem>>, vector<8x128xf32>
    %c0_10 = arith.constant 0 : index
    %c0_11 = arith.constant 0 : index
    %8 = vector.load %arg6[%c0_10, %c0_11] : memref<128x128xf32, #tpu.memory_space<vmem>>, vector<128x128xf32>
    %cst_12 = arith.constant dense<0.000000e+00> : vector<8x128xf32>
    %9 = tpu.matmul %7, %8, %cst_12 {dimension_numbers = #tpu.dot_dimension_numbers<[1], [0], [0], [1], [0, 0, 1, 1], [], []>} : vector<8x128xf32>, vector<128x128xf32>, vector<8x128xf32> -> vector<8x128xf32>
    %10 = arith.addf %6, %9 : vector<8x128xf32>
    %c0_13 = arith.constant 0 : index
    %c0_14 = arith.constant 0 : index
    %11 = vector.load %arg7[%c0_13, %c0_14] : memref<1x128xf32, #tpu.memory_space<vmem>>, vector<1x128xf32>
    %12 = vector.broadcast %11 : vector<1x128xf32> to vector<8x128xf32>
    %13 = arith.addf %10, %12 : vector<8x128xf32>
    %cst_15 = arith.constant 0.000000e+00 : f32
    %14 = vector.broadcast %cst_15 : f32 to vector<8x128xf32>
    %15 = arith.maximumf %13, %14 : vector<8x128xf32>
    %c0_16 = arith.constant 0 : index
    %c0_17 = arith.constant 0 : index
    %16 = vector.load %arg8[%c0_16, %c0_17] : memref<128x3xf32, #tpu.memory_space<vmem>>, vector<128x3xf32>
    %cst_18 = arith.constant dense<0.000000e+00> : vector<8x3xf32>
    %17 = tpu.matmul %15, %16, %cst_18 {dimension_numbers = #tpu.dot_dimension_numbers<[1], [0], [0], [1], [0, 0, 1, 1], [], []>} : vector<8x128xf32>, vector<128x3xf32>, vector<8x3xf32> -> vector<8x3xf32>
    %c0_19 = arith.constant 0 : index
    %c0_20 = arith.constant 0 : index
    %18 = vector.load %arg9[%c0_19, %c0_20] : memref<1x3xf32, #tpu.memory_space<vmem>>, vector<1x3xf32>
    %19 = vector.broadcast %18 : vector<1x3xf32> to vector<8x3xf32>
    %20 = arith.addf %17, %19 : vector<8x3xf32>
    %cst_21 = arith.constant 0.176776692 : f32
    %21 = vector.broadcast %cst_21 : f32 to vector<8x3xf32>
    %22 = arith.mulf %20, %21 : vector<8x3xf32>
    %cst_22 = arith.constant dense<0xFF800000> : vector<8xf32>
    %23 = vector.multi_reduction <maximumf>, %22, %cst_22 [1] : vector<8x3xf32> to vector<8xf32>
    %24 = vector.shape_cast %23 : vector<8xf32> to vector<8x1xf32>
    %25 = vector.broadcast %24 : vector<8x1xf32> to vector<8x3xf32>
    %26 = arith.subf %22, %25 : vector<8x3xf32>
    %27 = math.exp %26 : vector<8x3xf32>
    %cst_23 = arith.constant dense<0.000000e+00> : vector<8xf32>
    %28 = vector.multi_reduction <add>, %27, %cst_23 [1] : vector<8x3xf32> to vector<8xf32>
    %29 = vector.shape_cast %28 : vector<8xf32> to vector<8x1xf32>
    %30 = tpu.reciprocal %29 : vector<8x1xf32> -> vector<8x1xf32>
    %31 = vector.broadcast %30 : vector<8x1xf32> to vector<8x3xf32>
    %32 = arith.mulf %27, %31 : vector<8x3xf32>
    %c0_24 = arith.constant 0 : index
    %c0_25 = arith.constant 0 : index
    %33 = vector.load %arg10[%c0_24, %c0_25] : memref<8x3xf32, #tpu.memory_space<vmem>>, vector<8x3xf32>
    tpu.vector_store %arg10[%c0_24, %c0_25], %32 {strides = array<i32>} : memref<8x3xf32, #tpu.memory_space<vmem>>, vector<8x3xf32>,
    %c0_26 = arith.constant 0 : index
    %c0_27 = arith.constant 0 : index
    %34 = vector.load %arg1[%c0_26, %c0_27] : memref<8x128xf32, #tpu.memory_space<vmem>>, vector<8x128xf32>
    %35 = vector.extract_strided_slice %32 {offsets = [0, 0], sizes = [8, 1], strides = [1, 1]} : vector<8x3xf32> to vector<8x1xf32>
    %36 = vector.broadcast %35 : vector<8x1xf32> to vector<8x128xf32>
    %37 = arith.mulf %34, %36 : vector<8x128xf32>
    %c0_28 = arith.constant 0 : index
    %c0_29 = arith.constant 0 : index
    %38 = vector.load %arg2[%c0_28, %c0_29] : memref<8x128xf32, #tpu.memory_space<vmem>>, vector<8x128xf32>
    %39 = vector.extract_strided_slice %32 {offsets = [0, 1], sizes = [8, 1], strides = [1, 1]} : vector<8x3xf32> to vector<8x1xf32>
    %40 = vector.broadcast %39 : vector<8x1xf32> to vector<8x128xf32>
    %41 = arith.mulf %38, %40 : vector<8x128xf32>
    %42 = arith.addf %37, %41 : vector<8x128xf32>
    %c0_30 = arith.constant 0 : index
    %c0_31 = arith.constant 0 : index
    %43 = vector.load %arg3[%c0_30, %c0_31] : memref<8x128xf32, #tpu.memory_space<vmem>>, vector<8x128xf32>
    %44 = vector.extract_strided_slice %32 {offsets = [0, 2], sizes = [8, 1], strides = [1, 1]} : vector<8x3xf32> to vector<8x1xf32>
    %45 = vector.broadcast %44 : vector<8x1xf32> to vector<8x128xf32>
    %46 = arith.mulf %43, %45 : vector<8x128xf32>
    %47 = arith.addf %42, %46 : vector<8x128xf32>
    %c0_32 = arith.constant 0 : index
    %c0_33 = arith.constant 0 : index
    %48 = vector.load %arg11[%c0_32, %c0_33] : memref<8x128xf32, #tpu.memory_space<vmem>>, vector<8x128xf32>
    tpu.vector_store %arg11[%c0_32, %c0_33], %47 {strides = array<i32>} : memref<8x128xf32, #tpu.memory_space<vmem>>, vector<8x128xf32>,
    return
  }
  func.func @transform_0(%arg0: i32) -> (i32, i32) {
    %c0_i32 = arith.constant 0 : i32
    %c0_i32_0 = arith.constant 0 : i32
    return %arg0, %c0_i32 : i32, i32
  }
  func.func @transform_1(%arg0: i32) -> (i32, i32) {
    %c0_i32 = arith.constant 0 : i32
    %c0_i32_0 = arith.constant 0 : i32
    return %arg0, %c0_i32 : i32, i32
  }
  func.func @transform_2(%arg0: i32) -> (i32, i32) {
    %c0_i32 = arith.constant 0 : i32
    %c0_i32_0 = arith.constant 0 : i32
    return %arg0, %c0_i32 : i32, i32
  }
  func.func @transform_3(%arg0: i32) -> (i32, i32) {
    %c0_i32 = arith.constant 0 : i32
    %c0_i32_0 = arith.constant 0 : i32
    %c0_i32_1 = arith.constant 0 : i32
    return %c0_i32, %c0_i32_0 : i32, i32
  }
  func.func @transform_4(%arg0: i32) -> (i32, i32) {
    %c0_i32 = arith.constant 0 : i32
    %c0_i32_0 = arith.constant 0 : i32
    %c0_i32_1 = arith.constant 0 : i32
    return %c0_i32, %c0_i32_0 : i32, i32
  }
  func.func @transform_5(%arg0: i32) -> (i32, i32) {
    %c0_i32 = arith.constant 0 : i32
    %c0_i32_0 = arith.constant 0 : i32
    %c0_i32_1 = arith.constant 0 : i32
    return %c0_i32, %c0_i32_0 : i32, i32
  }
  func.func @transform_6(%arg0: i32) -> (i32, i32) {
    %c0_i32 = arith.constant 0 : i32
    %c0_i32_0 = arith.constant 0 : i32
    %c0_i32_1 = arith.constant 0 : i32
    return %c0_i32, %c0_i32_0 : i32, i32
  }
  func.func @transform_7(%arg0: i32) -> (i32, i32) {
    %c0_i32 = arith.constant 0 : i32
    %c0_i32_0 = arith.constant 0 : i32
    %c0_i32_1 = arith.constant 0 : i32
    return %c0_i32, %c0_i32_0 : i32, i32
  }
  func.func @transform_8(%arg0: i32) -> (i32, i32) {
    %c0_i32 = arith.constant 0 : i32
    %c0_i32_0 = arith.constant 0 : i32
    %c0_i32_1 = arith.constant 0 : i32
    return %c0_i32, %c0_i32_0 : i32, i32
  }
  func.func @transform_9(%arg0: i32) -> (i32, i32) {
    %c0_i32 = arith.constant 0 : i32
    %c0_i32_0 = arith.constant 0 : i32
    return %arg0, %c0_i32 : i32, i32
  }
  func.func @transform_10(%arg0: i32) -> (i32, i32) {
    %c0_i32 = arith.constant 0 : i32
    %c0_i32_0 = arith.constant 0 : i32
    return %arg0, %c0_i32 : i32, i32
  }
}

module attributes {stable_mosaic.version = 11 : i64} {
  func.func @_attention_kernel(%arg0: i32, %arg1: memref<8x128xf32, #tpu.memory_space<vmem>>, %arg2: memref<8x128xf32, #tpu.memory_space<vmem>>, %arg3: memref<8x128xf32, #tpu.memory_space<vmem>>, %arg4: memref<128x128xf32, #tpu.memory_space<vmem>>, %arg5: memref<128x128xf32, #tpu.memory_space<vmem>>, %arg6: memref<128x128xf32, #tpu.memory_space<vmem>>, %arg7: memref<1x128xf32, #tpu.memory_space<vmem>>, %arg8: memref<128x3xf32, #tpu.memory_space<vmem>>, %arg9: memref<1x3xf32, #tpu.memory_space<vmem>>, %arg10: memref<8x3xf32, #tpu.memory_space<vmem>>, %arg11: memref<8x128xf32, #tpu.memory_space<vmem>>) attributes {dimension_semantics = [#tpu.dimension_semantics<parallel>], iteration_bounds = array<i64: 1>, scalar_prefetch = 0 : i64, scratch_operands = 0 : i64, tpu.core_type = #tpu.core_type<tc>, window_params = [{transform_indices = @transform_0, window_bounds = array<i64: 8, 128>}, {transform_indices = @transform_1, window_bounds = array<i64: 8, 128>}, {transform_indices = @transform_2, window_bounds = array<i64: 8, 128>}, {pipeline_mode = #tpu.pipeline_mode<synchronous>, transform_indices = @transform_3, window_bounds = array<i64: 128, 128>}, {pipeline_mode = #tpu.pipeline_mode<synchronous>, transform_indices = @transform_4, window_bounds = array<i64: 128, 128>}, {pipeline_mode = #tpu.pipeline_mode<synchronous>, transform_indices = @transform_5, window_bounds = array<i64: 128, 128>}, {pipeline_mode = #tpu.pipeline_mode<synchronous>, transform_indices = @transform_6, window_bounds = array<i64: 1, 128>}, {pipeline_mode = #tpu.pipeline_mode<synchronous>, transform_indices = @transform_7, window_bounds = array<i64: 128, 3>}, {pipeline_mode = #tpu.pipeline_mode<synchronous>, transform_indices = @transform_8, window_bounds = array<i64: 1, 3>}, {transform_indices = @transform_9, window_bounds = array<i64: 8, 3>}, {transform_indices = @transform_10, window_bounds = array<i64: 8, 128>}]} {
    %c0 = arith.constant 0 : index
    %c0_0 = arith.constant 0 : index
    %0 = vector.load %arg1[%c0, %c0_0] : memref<8x128xf32, #tpu.memory_space<vmem>>, vector<8x128xf32>
    %c0_1 = arith.constant 0 : index
    %c0_2 = arith.constant 0 : index
    %1 = vector.load %arg4[%c0_1, %c0_2] : memref<128x128xf32, #tpu.memory_space<vmem>>, vector<128x128xf32>
    %cst = arith.constant dense<0.000000e+00> : vector<8x128xf32>
    %2 = tpu.matmul %0, %1, %cst {dimension_numbers = #tpu.dot_dimension_numbers<[1], [0], [0], [1], [0, 0, 1, 1], [], []>} : vector<8x128xf32>, vector<128x128xf32>, vector<8x128xf32> -> vector<8x128xf32>
    %c0_3 = arith.constant 0 : index
    %c0_4 = arith.constant 0 : index
    %3 = vector.load %arg2[%c0_3, %c0_4] : memref<8x128xf32, #tpu.memory_space<vmem>>, vector<8x128xf32>
    %c0_5 = arith.constant 0 : index
    %c0_6 = arith.constant 0 : index
    %4 = vector.load %arg5[%c0_5, %c0_6] : memref<128x128xf32, #tpu.memory_space<vmem>>, vector<128x128xf32>
    %cst_7 = arith.constant dense<0.000000e+00> : vector<8x128xf32>
    %5 = tpu.matmul %3, %4, %cst_7 {dimension_numbers = #tpu.dot_dimension_numbers<[1], [0], [0], [1], [0, 0, 1, 1], [], []>} : vector<8x128xf32>, vector<128x128xf32>, vector<8x128xf32> -> vector<8x128xf32>
    %6 = arith.addf %2, %5 : vector<8x128xf32>
    %c0_8 = arith.constant 0 : index
    %c0_9 = arith.constant 0 : index
    %7 = vector.load %arg3[%c0_8, %c0_9] : memref<8x128xf32, #tpu.memory_space<vmem>>, vector<8x128xf32>
    %c0_10 = arith.constant 0 : index
    %c0_11 = arith.constant 0 : index
    %8 = vector.load %arg6[%c0_10, %c0_11] : memref<128x128xf32, #tpu.memory_space<vmem>>, vector<128x128xf32>
    %cst_12 = arith.constant dense<0.000000e+00> : vector<8x128xf32>
    %9 = tpu.matmul %7, %8, %cst_12 {dimension_numbers = #tpu.dot_dimension_numbers<[1], [0], [0], [1], [0, 0, 1, 1], [], []>} : vector<8x128xf32>, vector<128x128xf32>, vector<8x128xf32> -> vector<8x128xf32>
    %10 = arith.addf %6, %9 : vector<8x128xf32>
    %c0_13 = arith.constant 0 : index
    %c0_14 = arith.constant 0 : index
    %11 = vector.load %arg7[%c0_13, %c0_14] : memref<1x128xf32, #tpu.memory_space<vmem>>, vector<1x128xf32>
    %12 = vector.broadcast %11 : vector<1x128xf32> to vector<8x128xf32>
    %13 = arith.addf %10, %12 : vector<8x128xf32>
    %cst_15 = arith.constant 0.000000e+00 : f32
    %14 = vector.broadcast %cst_15 : f32 to vector<8x128xf32>
    %15 = arith.maximumf %13, %14 : vector<8x128xf32>
    %c0_16 = arith.constant 0 : index
    %c0_17 = arith.constant 0 : index
    %16 = vector.load %arg8[%c0_16, %c0_17] : memref<128x3xf32, #tpu.memory_space<vmem>>, vector<128x3xf32>
    %cst_18 = arith.constant dense<0.000000e+00> : vector<8x3xf32>
    %17 = tpu.matmul %15, %16, %cst_18 {dimension_numbers = #tpu.dot_dimension_numbers<[1], [0], [0], [1], [0, 0, 1, 1], [], []>} : vector<8x128xf32>, vector<128x3xf32>, vector<8x3xf32> -> vector<8x3xf32>
    %c0_19 = arith.constant 0 : index
    %c0_20 = arith.constant 0 : index
    %18 = vector.load %arg9[%c0_19, %c0_20] : memref<1x3xf32, #tpu.memory_space<vmem>>, vector<1x3xf32>
    %19 = vector.broadcast %18 : vector<1x3xf32> to vector<8x3xf32>
    %20 = arith.addf %17, %19 : vector<8x3xf32>
    %cst_21 = arith.constant 0.176776692 : f32
    %21 = vector.broadcast %cst_21 : f32 to vector<8x3xf32>
    %22 = arith.mulf %20, %21 : vector<8x3xf32>
    %cst_22 = arith.constant dense<0xFF800000> : vector<8xf32>
    %23 = vector.multi_reduction <maximumf>, %22, %cst_22 [1] : vector<8x3xf32> to vector<8xf32>
    %24 = vector.shape_cast %23 : vector<8xf32> to vector<8x1xf32>
    %25 = vector.broadcast %24 : vector<8x1xf32> to vector<8x3xf32>
    %26 = arith.subf %22, %25 : vector<8x3xf32>
    %27 = math.exp %26 : vector<8x3xf32>
    %cst_23 = arith.constant dense<0.000000e+00> : vector<8xf32>
    %28 = vector.multi_reduction <add>, %27, %cst_23 [1] : vector<8x3xf32> to vector<8xf32>
    %29 = vector.shape_cast %28 : vector<8xf32> to vector<8x1xf32>
    %30 = tpu.reciprocal %29 : vector<8x1xf32> -> vector<8x1xf32>
    %31 = vector.broadcast %30 : vector<8x1xf32> to vector<8x3xf32>
    %32 = arith.mulf %27, %31 : vector<8x3xf32>
    %c0_24 = arith.constant 0 : index
    %c0_25 = arith.constant 0 : index
    %33 = vector.load %arg10[%c0_24, %c0_25] : memref<8x3xf32, #tpu.memory_space<vmem>>, vector<8x3xf32>
    tpu.vector_store %arg10[%c0_24, %c0_25], %32 {strides = array<i32>} : memref<8x3xf32, #tpu.memory_space<vmem>>, vector<8x3xf32>,
    %c0_26 = arith.constant 0 : index
    %c0_27 = arith.constant 0 : index
    %34 = vector.load %arg1[%c0_26, %c0_27] : memref<8x128xf32, #tpu.memory_space<vmem>>, vector<8x128xf32>
    %35 = vector.extract_strided_slice %32 {offsets = [0, 0], sizes = [8, 1], strides = [1, 1]} : vector<8x3xf32> to vector<8x1xf32>
    %36 = vector.broadcast %35 : vector<8x1xf32> to vector<8x128xf32>
    %37 = arith.mulf %34, %36 : vector<8x128xf32>
    %c0_28 = arith.constant 0 : index
    %c0_29 = arith.constant 0 : index
    %38 = vector.load %arg2[%c0_28, %c0_29] : memref<8x128xf32, #tpu.memory_space<vmem>>, vector<8x128xf32>
    %39 = vector.extract_strided_slice %32 {offsets = [0, 1], sizes = [8, 1], strides = [1, 1]} : vector<8x3xf32> to vector<8x1xf32>
    %40 = vector.broadcast %39 : vector<8x1xf32> to vector<8x128xf32>
    %41 = arith.mulf %38, %40 : vector<8x128xf32>
    %42 = arith.addf %37, %41 : vector<8x128xf32>
    %c0_30 = arith.constant 0 : index
    %c0_31 = arith.constant 0 : index
    %43 = vector.load %arg3[%c0_30, %c0_31] : memref<8x128xf32, #tpu.memory_space<vmem>>, vector<8x128xf32>
    %44 = vector.extract_strided_slice %32 {offsets = [0, 2], sizes = [8, 1], strides = [1, 1]} : vector<8x3xf32> to vector<8x1xf32>
    %45 = vector.broadcast %44 : vector<8x1xf32> to vector<8x128xf32>
    %46 = arith.mulf %43, %45 : vector<8x128xf32>
    %47 = arith.addf %42, %46 : vector<8x128xf32>
    %c0_32 = arith.constant 0 : index
    %c0_33 = arith.constant 0 : index
    %48 = vector.load %arg11[%c0_32, %c0_33] : memref<8x128xf32, #tpu.memory_space<vmem>>, vector<8x128xf32>
    tpu.vector_store %arg11[%c0_32, %c0_33], %47 {strides = array<i32>} : memref<8x128xf32, #tpu.memory_space<vmem>>, vector<8x128xf32>,
    return
  }
  func.func @transform_0(%arg0: i32) -> (i32, i32) {
    %c0_i32 = arith.constant 0 : i32
    %c0_i32_0 = arith.constant 0 : i32
    return %arg0, %c0_i32 : i32, i32
  }
  func.func @transform_1(%arg0: i32) -> (i32, i32) {
    %c0_i32 = arith.constant 0 : i32
    %c0_i32_0 = arith.constant 0 : i32
    return %arg0, %c0_i32 : i32, i32
  }
  func.func @transform_2(%arg0: i32) -> (i32, i32) {
    %c0_i32 = arith.constant 0 : i32
    %c0_i32_0 = arith.constant 0 : i32
    return %arg0, %c0_i32 : i32, i32
  }
  func.func @transform_3(%arg0: i32) -> (i32, i32) {
    %c0_i32 = arith.constant 0 : i32
    %c0_i32_0 = arith.constant 0 : i32
    %c0_i32_1 = arith.constant 0 : i32
    return %c0_i32, %c0_i32_0 : i32, i32
  }
  func.func @transform_4(%arg0: i32) -> (i32, i32) {
    %c0_i32 = arith.constant 0 : i32
    %c0_i32_0 = arith.constant 0 : i32
    %c0_i32_1 = arith.constant 0 : i32
    return %c0_i32, %c0_i32_0 : i32, i32
  }
  func.func @transform_5(%arg0: i32) -> (i32, i32) {
    %c0_i32 = arith.constant 0 : i32
    %c0_i32_0 = arith.constant 0 : i32
    %c0_i32_1 = arith.constant 0 : i32
    return %c0_i32, %c0_i32_0 : i32, i32
  }
  func.func @transform_6(%arg0: i32) -> (i32, i32) {
    %c0_i32 = arith.constant 0 : i32
    %c0_i32_0 = arith.constant 0 : i32
    %c0_i32_1 = arith.constant 0 : i32
    return %c0_i32, %c0_i32_0 : i32, i32
  }
  func.func @transform_7(%arg0: i32) -> (i32, i32) {
    %c0_i32 = arith.constant 0 : i32
    %c0_i32_0 = arith.constant 0 : i32
    %c0_i32_1 = arith.constant 0 : i32
    return %c0_i32, %c0_i32_0 : i32, i32
  }
  func.func @transform_8(%arg0: i32) -> (i32, i32) {
    %c0_i32 = arith.constant 0 : i32
    %c0_i32_0 = arith.constant 0 : i32
    %c0_i32_1 = arith.constant 0 : i32
    return %c0_i32, %c0_i32_0 : i32, i32
  }
  func.func @transform_9(%arg0: i32) -> (i32, i32) {
    %c0_i32 = arith.constant 0 : i32
    %c0_i32_0 = arith.constant 0 : i32
    return %arg0, %c0_i32 : i32, i32
  }
  func.func @transform_10(%arg0: i32) -> (i32, i32) {
    %c0_i32 = arith.constant 0 : i32
    %c0_i32_0 = arith.constant 0 : i32
    return %arg0, %c0_i32 : i32, i32
  }
}

</mosaic_0001>

<llo_original>
// kernel: tpu_custom_call.1
$region0: #{tpu_custom_call.1}
  #allocation0 [shape = 'u32[]', space=smem, size = 0x4, offset = 0x4, fixed_abs, tag = 'smem constant byte address 0x4 - core index']
  #allocation1 [shape = 'u32[144,128]{1,0:T(1,128)}', space=vmem, size = 0x12000, scoped, tag = 'internal scratch']
  %s0 = inlined_call_operand.vmem [shape: f32[8,128], index: 0, kind: input, shape index: {}]
  %s1 = inlined_call_operand.hbm [shape: f32[8,128], index: 1, kind: input, shape index: {}]
  %s2 = inlined_call_operand.hbm [shape: f32[8,128], index: 2, kind: input, shape index: {}]
  %s3 = inlined_call_operand.vmem [shape: f32[128,128], index: 3, kind: input, shape index: {}]
  %s4 = inlined_call_operand.hbm [shape: f32[128,128], index: 4, kind: input, shape index: {}]
  %s5 = inlined_call_operand.hbm [shape: f32[128,128], index: 5, kind: input, shape index: {}]
  %s6 = inlined_call_operand.vmem [shape: f32[1,128], index: 6, kind: input, shape index: {}]
  %s7 = inlined_call_operand.vmem [shape: f32[128,3], index: 7, kind: input, shape index: {}]
  %s8 = inlined_call_operand.vmem [shape: f32[1,3], index: 8, kind: input, shape index: {}]
  %s9 = inlined_call_operand.vmem [shape: f32[8,3], index: 9, kind: output, shape index: {0}]
  %s10 = inlined_call_operand.hbm [shape: f32[8,128], index: 10, kind: output, shape index: {1}]
  %11 = xla_tuple %s9, %s10
  %s12 = sld [smem:[#allocation0]]
  $region70: #{tpu_custom_call.1} parent=0
    _
  %s14 = ssub.s32 1, %s12
  %s15 = scalar_select 0, %s14, %s12
  $region1: #{tpu_custom_call.1} parent=0
    #allocation2 [shape = 'u8[4096]{0}', space=vmem, size = 0x1000, scoped, tag = 'input window, operand 1, single buffered']
    #allocation3 [shape = 's32[1]{0}', space=sflag, size = 0x4, scoped, tag = 'scoped memory for tpu_custom_call.1']
    #allocation4 [shape = 's32[1]{0}', space=sflag, size = 0x4, scoped, tag = 'scoped memory for tpu_custom_call.1']
    #allocation5 [shape = 'u8[4096]{0}', space=vmem, size = 0x1000, scoped, tag = 'input window, operand 2, single buffered']
    #allocation6 [shape = 's32[1]{0}', space=sflag, size = 0x4, scoped, tag = 'scoped memory for tpu_custom_call.1']
    #allocation7 [shape = 'u8[65536]{0}', space=vmem, size = 0x10000, scoped, tag = 'input window, operand 4, single buffered']
    #allocation8 [shape = 'u8[65536]{0}', space=vmem, size = 0x10000, scoped, tag = 'input window, operand 5, single buffered']
    #allocation9 [shape = 's32[1]{0}', space=sflag, size = 0x4, scoped, tag = 'scoped memory for tpu_custom_call.1']
    #allocation10 [shape = 'u8[4096]{0}', space=vmem, size = 0x1000, scoped, tag = 'output window, operand 1, single buffered']
    %16 = vsyncpa [#allocation3], 0
    %17 = vsyncpa [#allocation6], 0
    %18 = vsyncpa [#allocation9], 0
    %19 = vsyncpa [#allocation4], 0
    // Predicated region
    $region2: #{tpu_custom_call.1} parent=1 // pred_check
      _
    $region3: #{tpu_custom_call.1} parent=1 // pred_check_branch
      %21 = sbr.rel (0) target = $region5
    $region4: #{tpu_custom_call.1} parent=1 // pred_region
      _
    $region5: #{tpu_custom_call.1} parent=1 // pred_fallthru
      _
    // Predicated region
    $region6: #{tpu_custom_call.1} parent=1 // pred_check
      _
    $region7: #{tpu_custom_call.1} parent=1 // pred_check_branch
      %23 = sbr.rel (0) target = $region9
    $region8: #{tpu_custom_call.1} parent=1 // pred_region
      %s25 = ssub.s32 128, 128
      %26 = vsyncadd [#allocation3], %s25
      %s28 = sshll.u32 [#allocation2], 4
      %s29 = int_to_ptr.vmem [resolvable:$true] %s28
      %31 = dma.hbm_to_vmem [thread:$0]  %s1, 128, %s29, [#allocation3]
    $region9: #{tpu_custom_call.1} parent=1 // pred_fallthru
      _
    // Predicated region
    $region10: #{tpu_custom_call.1} parent=1 // pred_check
      _
    $region11: #{tpu_custom_call.1} parent=1 // pred_check_branch
      %33 = sbr.rel (0) target = $region13
    $region12: #{tpu_custom_call.1} parent=1 // pred_region
      %s35 = ssub.s32 128, 128
      %36 = vsyncadd [#allocation6], %s35
      %s38 = sshll.u32 [#allocation5], 4
      %s39 = int_to_ptr.vmem [resolvable:$true] %s38
      %41 = dma.hbm_to_vmem [thread:$0]  %s2, 128, %s39, [#allocation6]
    $region13: #{tpu_custom_call.1} parent=1 // pred_fallthru
      _
    // Predicated region
    $region14: #{tpu_custom_call.1} parent=1 // pred_check
      _
    $region15: #{tpu_custom_call.1} parent=1 // pred_check_branch
      %43 = sbr.rel (0) target = $region17
    $region16: #{tpu_custom_call.1} parent=1 // pred_region
      _
    $region17: #{tpu_custom_call.1} parent=1 // pred_fallthru
      _
    // Predicated region
    $region18: #{tpu_custom_call.1} parent=1 // pred_check
      _
    $region19: #{tpu_custom_call.1} parent=1 // pred_check_branch
      %45 = sbr.rel (0) target = $region21
    $region20: #{tpu_custom_call.1} parent=1 // pred_region
      %s47 = ssub.s32 2048, 2048
      %48 = vsyncadd [#allocation6], %s47
      %s49 = sshll.u32 [#allocation7], 4
      %s50 = int_to_ptr.vmem [resolvable:$true] %s49
      %55 = dma.hbm_to_vmem [thread:$0]  %s4, 2048, %s50, [#allocation6], 128, 128, 8
    $region21: #{tpu_custom_call.1} parent=1 // pred_fallthru
      _
    // Predicated region
    $region22: #{tpu_custom_call.1} parent=1 // pred_check
      _
    $region23: #{tpu_custom_call.1} parent=1 // pred_check_branch
      %57 = sbr.rel (0) target = $region25
    $region24: #{tpu_custom_call.1} parent=1 // pred_region
      %s59 = ssub.s32 2048, 2048
      %60 = vsyncadd [#allocation9], %s59
      %s61 = sshll.u32 [#allocation8], 4
      %s62 = int_to_ptr.vmem [resolvable:$true] %s61
      %67 = dma.hbm_to_vmem [thread:$0]  %s5, 2048, %s62, [#allocation9], 128, 128, 8
    $region25: #{tpu_custom_call.1} parent=1 // pred_fallthru
      _
    // Predicated region
    $region26: #{tpu_custom_call.1} parent=1 // pred_check
      _
    $region27: #{tpu_custom_call.1} parent=1 // pred_check_branch
      %69 = sbr.rel (0) target = $region29
    $region28: #{tpu_custom_call.1} parent=1 // pred_region
      _
    $region29: #{tpu_custom_call.1} parent=1 // pred_fallthru
      _
    // Predicated region
    $region30: #{tpu_custom_call.1} parent=1 // pred_check
      _
    $region31: #{tpu_custom_call.1} parent=1 // pred_check_branch
      %71 = sbr.rel (0) target = $region33
    $region32: #{tpu_custom_call.1} parent=1 // pred_region
      _
    $region33: #{tpu_custom_call.1} parent=1 // pred_fallthru
      _
    // Predicated region
    $region34: #{tpu_custom_call.1} parent=1 // pred_check
      _
    $region35: #{tpu_custom_call.1} parent=1 // pred_check_branch
      %73 = sbr.rel (0) target = $region37
    $region36: #{tpu_custom_call.1} parent=1 // pred_region
      _
    $region37: #{tpu_custom_call.1} parent=1 // pred_fallthru
      _
    // Predicated region
    $region38: #{tpu_custom_call.1} parent=1 // pred_check
      _
    $region39: #{tpu_custom_call.1} parent=1 // pred_check_branch
      %75 = sbr.rel (0) target = $region41
    $region40: #{tpu_custom_call.1} parent=1 // pred_region
      %76 = dma.done [#allocation3], 128
    $region41: #{tpu_custom_call.1} parent=1 // pred_fallthru
      _
    // Predicated region
    $region42: #{tpu_custom_call.1} parent=1 // pred_check
      _
    $region43: #{tpu_custom_call.1} parent=1 // pred_check_branch
      %78 = sbr.rel (0) target = $region45
    $region44: #{tpu_custom_call.1} parent=1 // pred_region
      %79 = dma.done [#allocation6], 128
    $region45: #{tpu_custom_call.1} parent=1 // pred_fallthru
      _
    // Predicated region
    $region46: #{tpu_custom_call.1} parent=1 // pred_check
      _
    $region47: #{tpu_custom_call.1} parent=1 // pred_check_branch
      %81 = sbr.rel (0) target = $region49
    $region48: #{tpu_custom_call.1} parent=1 // pred_region
      %82 = dma.done [#allocation6], 2048
    $region49: #{tpu_custom_call.1} parent=1 // pred_fallthru
      _
    // Predicated region
    $region50: #{tpu_custom_call.1} parent=1 // pred_check
      _
    $region51: #{tpu_custom_call.1} parent=1 // pred_check_branch
      %84 = sbr.rel (0) target = $region53
    $region52: #{tpu_custom_call.1} parent=1 // pred_region
      %85 = dma.done [#allocation9], 2048
    $region53: #{tpu_custom_call.1} parent=1 // pred_fallthru
      _
    %v86 = vld [vmem:[%s0] sm:$0xff]
    %v87 = vld [vmem:[%s3] sm:$0xff]
    %v88 = vld [vmem:[%s3 + $0x8] sm:$0xff]
    %v89 = vld [vmem:[%s3 + $0x10] sm:$0xff]
    %v90 = vld [vmem:[%s3 + $0x18] sm:$0xff]
    %v91 = vld [vmem:[%s3 + $0x20] sm:$0xff]
    %v92 = vld [vmem:[%s3 + $0x28] sm:$0xff]
    %v93 = vld [vmem:[%s3 + $0x30] sm:$0xff]
    %v94 = vld [vmem:[%s3 + $0x38] sm:$0xff]
    %v95 = vld [vmem:[%s3 + $0x40] sm:$0xff]
    %v96 = vld [vmem:[%s3 + $0x48] sm:$0xff]
    %v97 = vld [vmem:[%s3 + $0x50] sm:$0xff]
    %v98 = vld [vmem:[%s3 + $0x58] sm:$0xff]
    %v99 = vld [vmem:[%s3 + $0x60] sm:$0xff]
    %v100 = vld [vmem:[%s3 + $0x68] sm:$0xff]
    %v101 = vld [vmem:[%s3 + $0x70] sm:$0xff]
    %v102 = vld [vmem:[%s3 + $0x78] sm:$0xff]
    %v103 = vld [vmem:[#allocation2] sm:$0xff]
    %v104 = vld [vmem:[#allocation7] sm:$0xff]
    %v105 = vld [vmem:[#allocation7 + $0x8] sm:$0xff]
    %v106 = vld [vmem:[#allocation7 + $0x10] sm:$0xff]
    %v107 = vld [vmem:[#allocation7 + $0x18] sm:$0xff]
    %v108 = vld [vmem:[#allocation7 + $0x20] sm:$0xff]
    %v109 = vld [vmem:[#allocation7 + $0x28] sm:$0xff]
    %v110 = vld [vmem:[#allocation7 + $0x30] sm:$0xff]
    %v111 = vld [vmem:[#allocation7 + $0x38] sm:$0xff]
    %v112 = vld [vmem:[#allocation7 + $0x40] sm:$0xff]
    %v113 = vld [vmem:[#allocation7 + $0x48] sm:$0xff]
    %v114 = vld [vmem:[#allocation7 + $0x50] sm:$0xff]
    %v115 = vld [vmem:[#allocation7 + $0x58] sm:$0xff]
    %v116 = vld [vmem:[#allocation7 + $0x60] sm:$0xff]
    %v117 = vld [vmem:[#allocation7 + $0x68] sm:$0xff]
    %v118 = vld [vmem:[#allocation7 + $0x70] sm:$0xff]
    %v119 = vld [vmem:[#allocation7 + $0x78] sm:$0xff]
    %120 = vmatprep.subr.mxu0 0.0
    %121 = vmatpush1.msra.mxu0 %v104
    %122 = vmatprep.subr.mxu0 0.0
    %123 = vmatpush1.msra.mxu0 %v105
    %124 = vmatprep.subr.mxu0 0.0
    %125 = vmatpush1.msra.mxu0 %v106
    %126 = vmatprep.subr.mxu0 0.0
    %127 = vmatpush1.msra.mxu0 %v107
    %128 = vmatprep.subr.mxu0 0.0
    %129 = vmatpush1.msra.mxu0 %v108
    %130 = vmatprep.subr.mxu0 0.0
    %131 = vmatpush1.msra.mxu0 %v109
    %132 = vmatprep.subr.mxu0 0.0
    %133 = vmatpush1.msra.mxu0 %v110
    %134 = vmatprep.subr.mxu0 0.0
    %135 = vmatpush1.msra.mxu0 %v111
    %136 = vmatprep.subr.mxu0 0.0
    %137 = vmatpush1.msra.mxu0 %v112
    %138 = vmatprep.subr.mxu0 0.0
    %139 = vmatpush1.msra.mxu0 %v113
    %140 = vmatprep.subr.mxu0 0.0
    %141 = vmatpush1.msra.mxu0 %v114
    %142 = vmatprep.subr.mxu0 0.0
    %143 = vmatpush1.msra.mxu0 %v115
    %144 = vmatprep.subr.mxu0 0.0
    %145 = vmatpush1.msra.mxu0 %v116
    %146 = vmatprep.subr.mxu0 0.0
    %147 = vmatpush1.msra.mxu0 %v117
    %148 = vmatprep.subr.mxu0 0.0
    %149 = vmatpush1.msra.mxu0 %v118
    %150 = vmatprep.subr.mxu0 0.0
    %151 = vmatpush1.msra.mxu0 %v119
    %152 = vmatprep.subr.mxu0 0.0
    %153 = vmatpush1.msra.mxu0 0.0
    %154 = vmatprep.subr.mxu0 0.0
    %155 = vmatpush1.msra.mxu0 0.0
    %156 = vmatprep.subr.mxu0 0.0
    %157 = vmatpush1.msra.mxu0 0.0
    %158 = vmatprep.subr.mxu0 0.0
    %159 = vmatpush1.msra.mxu0 0.0
    %160 = vmatprep.subr.mxu0 0.0
    %161 = vmatpush1.msra.mxu0 0.0
    %162 = vmatprep.subr.mxu0 0.0
    %163 = vmatpush1.msra.mxu0 0.0
    %164 = vmatprep.subr.mxu0 0.0
    %165 = vmatpush1.msra.mxu0 0.0
    %166 = vmatprep.subr.mxu0 0.0
    %167 = vmatpush1.msra.mxu0 0.0
    %168 = vmatprep.subr.mxu0 0.0
    %169 = vmatpush1.msra.mxu0 0.0
    %170 = vmatprep.subr.mxu0 0.0
    %171 = vmatpush1.msra.mxu0 0.0
    %172 = vmatprep.subr.mxu0 0.0
    %173 = vmatpush1.msra.mxu0 0.0
    %174 = vmatprep.subr.mxu0 0.0
    %175 = vmatpush1.msra.mxu0 0.0
    %176 = vmatprep.subr.mxu0 0.0
    %177 = vmatpush1.msra.mxu0 0.0
    %178 = vmatprep.subr.mxu0 0.0
    %179 = vmatpush1.msra.mxu0 0.0
    %180 = vmatprep.subr.mxu0 0.0
    %181 = vmatpush1.msra.mxu0 0.0
    %182 = vmatprep.subr.mxu0 0.0
    %183 = vmatpush1.msra.mxu0 0.0
    %184 = vmatprep.mubr.f32.mxu0 0.0
    %185 = vmatmul.mubr.f32.gmra.mrb[0].mxu0 %v103
    %v186 = vpop.f32.mrb[0].mxu0
    %v187 = vadd.f32 0.0, %v186
    %v188 = vpop.f32.mrb[0].mxu0
    %189 = vdwg.mxu0
    %190 = vmatprep.subr.mxu0 0.0
    %191 = vmatpush1.msra.mxu0 %v87
    %192 = vmatprep.subr.mxu0 0.0
    %193 = vmatpush1.msra.mxu0 %v88
    %194 = vmatprep.subr.mxu0 0.0
    %195 = vmatpush1.msra.mxu0 %v89
    %196 = vmatprep.subr.mxu0 0.0
    %197 = vmatpush1.msra.mxu0 %v90
    %198 = vmatprep.subr.mxu0 0.0
    %199 = vmatpush1.msra.mxu0 %v91
    %200 = vmatprep.subr.mxu0 0.0
    %201 = vmatpush1.msra.mxu0 %v92
    %202 = vmatprep.subr.mxu0 0.0
    %203 = vmatpush1.msra.mxu0 %v93
    %204 = vmatprep.subr.mxu0 0.0
    %205 = vmatpush1.msra.mxu0 %v94
    %206 = vmatprep.subr.mxu0 0.0
    %207 = vmatpush1.msra.mxu0 %v95
    %208 = vmatprep.subr.mxu0 0.0
    %209 = vmatpush1.msra.mxu0 %v96
    %210 = vmatprep.subr.mxu0 0.0
    %211 = vmatpush1.msra.mxu0 %v97
    %212 = vmatprep.subr.mxu0 0.0
    %213 = vmatpush1.msra.mxu0 %v98
    %214 = vmatprep.subr.mxu0 0.0
    %215 = vmatpush1.msra.mxu0 %v99
    %216 = vmatprep.subr.mxu0 0.0
    %217 = vmatpush1.msra.mxu0 %v100
    %218 = vmatprep.subr.mxu0 0.0
    %219 = vmatpush1.msra.mxu0 %v101
    %220 = vmatprep.subr.mxu0 0.0
    %221 = vmatpush1.msra.mxu0 %v102
    %222 = vmatprep.subr.mxu0 0.0
    %223 = vmatpush1.msra.mxu0 0.0
    %224 = vmatprep.subr.mxu0 0.0
    %225 = vmatpush1.msra.mxu0 0.0
    %226 = vmatprep.subr.mxu0 0.0
    %227 = vmatpush1.msra.mxu0 0.0
    %228 = vmatprep.subr.mxu0 0.0
    %229 = vmatpush1.msra.mxu0 0.0
    %230 = vmatprep.subr.mxu0 0.0
    %231 = vmatpush1.msra.mxu0 0.0
    %232 = vmatprep.subr.mxu0 0.0
    %233 = vmatpush1.msra.mxu0 0.0
    %234 = vmatprep.subr.mxu0 0.0
    %235 = vmatpush1.msra.mxu0 0.0
    %236 = vmatprep.subr.mxu0 0.0
    %237 = vmatpush1.msra.mxu0 0.0
    %238 = vmatprep.subr.mxu0 0.0
    %239 = vmatpush1.msra.mxu0 0.0
    %240 = vmatprep.subr.mxu0 0.0
    %241 = vmatpush1.msra.mxu0 0.0
    %242 = vmatprep.subr.mxu0 0.0
    %243 = vmatpush1.msra.mxu0 0.0
    %244 = vmatprep.subr.mxu0 0.0
    %245 = vmatpush1.msra.mxu0 0.0
    %246 = vmatprep.subr.mxu0 0.0
    %247 = vmatpush1.msra.mxu0 0.0
    %248 = vmatprep.subr.mxu0 0.0
    %249 = vmatpush1.msra.mxu0 0.0
    %250 = vmatprep.subr.mxu0 0.0
    %251 = vmatpush1.msra.mxu0 0.0
    %252 = vmatprep.subr.mxu0 0.0
    %253 = vmatpush1.msra.mxu0 0.0
    %254 = vmatprep.mubr.f32.mxu0 0.0
    %255 = vmatmul.mubr.f32.gmra.mrb[0].mxu0 %v86
    %v256 = vpop.f32.mrb[0].mxu0
    %v257 = vadd.f32 %v187, %v256
    %v258 = vpop.f32.mrb[0].mxu0
    %259 = vdwg.mxu0
    %v260 = vld [vmem:[#allocation5] sm:$0xff]
    %v261 = vld [vmem:[#allocation8] sm:$0xff]
    %v262 = vld [vmem:[#allocation8 + $0x8] sm:$0xff]
    %v263 = vld [vmem:[#allocation8 + $0x10] sm:$0xff]
    %v264 = vld [vmem:[#allocation8 + $0x18] sm:$0xff]
    %v265 = vld [vmem:[#allocation8 + $0x20] sm:$0xff]
    %v266 = vld [vmem:[#allocation8 + $0x28] sm:$0xff]
    %v267 = vld [vmem:[#allocation8 + $0x30] sm:$0xff]
    %v268 = vld [vmem:[#allocation8 + $0x38] sm:$0xff]
    %v269 = vld [vmem:[#allocation8 + $0x40] sm:$0xff]
    %v270 = vld [vmem:[#allocation8 + $0x48] sm:$0xff]
    %v271 = vld [vmem:[#allocation8 + $0x50] sm:$0xff]
    %v272 = vld [vmem:[#allocation8 + $0x58] sm:$0xff]
    %v273 = vld [vmem:[#allocation8 + $0x60] sm:$0xff]
    %v274 = vld [vmem:[#allocation8 + $0x68] sm:$0xff]
    %v275 = vld [vmem:[#allocation8 + $0x70] sm:$0xff]
    %v276 = vld [vmem:[#allocation8 + $0x78] sm:$0xff]
    %277 = vmatprep.subr.mxu0 0.0
    %278 = vmatpush1.msra.mxu0 %v261
    %279 = vmatprep.subr.mxu0 0.0
    %280 = vmatpush1.msra.mxu0 %v262
    %281 = vmatprep.subr.mxu0 0.0
    %282 = vmatpush1.msra.mxu0 %v263
    %283 = vmatprep.subr.mxu0 0.0
    %284 = vmatpush1.msra.mxu0 %v264
    %285 = vmatprep.subr.mxu0 0.0
    %286 = vmatpush1.msra.mxu0 %v265
    %287 = vmatprep.subr.mxu0 0.0
    %288 = vmatpush1.msra.mxu0 %v266
    %289 = vmatprep.subr.mxu0 0.0
    %290 = vmatpush1.msra.mxu0 %v267
    %291 = vmatprep.subr.mxu0 0.0
    %292 = vmatpush1.msra.mxu0 %v268
    %293 = vmatprep.subr.mxu0 0.0
    %294 = vmatpush1.msra.mxu0 %v269
    %295 = vmatprep.subr.mxu0 0.0
    %296 = vmatpush1.msra.mxu0 %v270
    %297 = vmatprep.subr.mxu0 0.0
    %298 = vmatpush1.msra.mxu0 %v271
    %299 = vmatprep.subr.mxu0 0.0
    %300 = vmatpush1.msra.mxu0 %v272
    %301 = vmatprep.subr.mxu0 0.0
    %302 = vmatpush1.msra.mxu0 %v273
    %303 = vmatprep.subr.mxu0 0.0
    %304 = vmatpush1.msra.mxu0 %v274
    %305 = vmatprep.subr.mxu0 0.0
    %306 = vmatpush1.msra.mxu0 %v275
    %307 = vmatprep.subr.mxu0 0.0
    %308 = vmatpush1.msra.mxu0 %v276
    %309 = vmatprep.subr.mxu0 0.0
    %310 = vmatpush1.msra.mxu0 0.0
    %311 = vmatprep.subr.mxu0 0.0
    %312 = vmatpush1.msra.mxu0 0.0
    %313 = vmatprep.subr.mxu0 0.0
    %314 = vmatpush1.msra.mxu0 0.0
    %315 = vmatprep.subr.mxu0 0.0
    %316 = vmatpush1.msra.mxu0 0.0
    %317 = vmatprep.subr.mxu0 0.0
    %318 = vmatpush1.msra.mxu0 0.0
    %319 = vmatprep.subr.mxu0 0.0
    %320 = vmatpush1.msra.mxu0 0.0
    %321 = vmatprep.subr.mxu0 0.0
    %322 = vmatpush1.msra.mxu0 0.0
    %323 = vmatprep.subr.mxu0 0.0
    %324 = vmatpush1.msra.mxu0 0.0
    %325 = vmatprep.subr.mxu0 0.0
    %326 = vmatpush1.msra.mxu0 0.0
    %327 = vmatprep.subr.mxu0 0.0
    %328 = vmatpush1.msra.mxu0 0.0
    %329 = vmatprep.subr.mxu0 0.0
    %330 = vmatpush1.msra.mxu0 0.0
    %331 = vmatprep.subr.mxu0 0.0
    %332 = vmatpush1.msra.mxu0 0.0
    %333 = vmatprep.subr.mxu0 0.0
    %334 = vmatpush1.msra.mxu0 0.0
    %335 = vmatprep.subr.mxu0 0.0
    %336 = vmatpush1.msra.mxu0 0.0
    %337 = vmatprep.subr.mxu0 0.0
    %338 = vmatpush1.msra.mxu0 0.0
    %339 = vmatprep.subr.mxu0 0.0
    %340 = vmatpush1.msra.mxu0 0.0
    %341 = vmatprep.mubr.f32.mxu0 0.0
    %342 = vmatmul.mubr.f32.gmra.mrb[0].mxu0 %v260
    %v343 = vpop.f32.mrb[0].mxu0
    %v344 = vadd.f32 0.0, %v343
    %v345 = vpop.f32.mrb[0].mxu0
    %346 = vdwg.mxu0
    %v347 = vadd.f32 %v257, %v344
    %v348 = vld [vmem:[%s6] sm:$0x1]
    %v350 = vlaneseq
    %v351 = vshrl.u32 %v350, 7
    %v352 = vsub.s32 0, %v351
    %v353 = vrot.slane %v348, %v352
    %v355 = vadd.f32 %v347, %v353
    %v356 = vmax.f32 %v355, 0.0
    %v357 = vld [vmem:[%s7] sm:$0xff]
    %v358 = vld [vmem:[%s7 + $0x8] sm:$0xff]
    %v359 = vld [vmem:[%s7 + $0x10] sm:$0xff]
    %v360 = vld [vmem:[%s7 + $0x18] sm:$0xff]
    %v361 = vld [vmem:[%s7 + $0x20] sm:$0xff]
    %v362 = vld [vmem:[%s7 + $0x28] sm:$0xff]
    %v363 = vld [vmem:[%s7 + $0x30] sm:$0xff]
    %v364 = vld [vmem:[%s7 + $0x38] sm:$0xff]
    %v365 = vld [vmem:[%s7 + $0x40] sm:$0xff]
    %v366 = vld [vmem:[%s7 + $0x48] sm:$0xff]
    %v367 = vld [vmem:[%s7 + $0x50] sm:$0xff]
    %v368 = vld [vmem:[%s7 + $0x58] sm:$0xff]
    %v369 = vld [vmem:[%s7 + $0x60] sm:$0xff]
    %v370 = vld [vmem:[%s7 + $0x68] sm:$0xff]
    %v371 = vld [vmem:[%s7 + $0x70] sm:$0xff]
    %v372 = vld [vmem:[%s7 + $0x78] sm:$0xff]
    %v373 = vld [vmem:[%s8] sm:$0x1]
    %v375 = vlaneseq
    %v376 = vshrl.u32 %v375, 7
    %v377 = vsub.s32 0, %v376
    %v378 = vrot.slane %v373, %v377
    %380 = vmatprep.subr.mxu0 0.0
    %381 = vmatpush1.msra.mxu0 %v357
    %382 = vmatprep.subr.mxu0 0.0
    %383 = vmatpush1.msra.mxu0 %v358
    %384 = vmatprep.subr.mxu0 0.0
    %385 = vmatpush1.msra.mxu0 %v359
    %386 = vmatprep.subr.mxu0 0.0
    %387 = vmatpush1.msra.mxu0 %v360
    %388 = vmatprep.subr.mxu0 0.0
    %389 = vmatpush1.msra.mxu0 %v361
    %390 = vmatprep.subr.mxu0 0.0
    %391 = vmatpush1.msra.mxu0 %v362
    %392 = vmatprep.subr.mxu0 0.0
    %393 = vmatpush1.msra.mxu0 %v363
    %394 = vmatprep.subr.mxu0 0.0
    %395 = vmatpush1.msra.mxu0 %v364
    %396 = vmatprep.subr.mxu0 0.0
    %397 = vmatpush1.msra.mxu0 %v365
    %398 = vmatprep.subr.mxu0 0.0
    %399 = vmatpush1.msra.mxu0 %v366
    %400 = vmatprep.subr.mxu0 0.0
    %401 = vmatpush1.msra.mxu0 %v367
    %402 = vmatprep.subr.mxu0 0.0
    %403 = vmatpush1.msra.mxu0 %v368
    %404 = vmatprep.subr.mxu0 0.0
    %405 = vmatpush1.msra.mxu0 %v369
    %406 = vmatprep.subr.mxu0 0.0
    %407 = vmatpush1.msra.mxu0 %v370
    %408 = vmatprep.subr.mxu0 0.0
    %409 = vmatpush1.msra.mxu0 %v371
    %410 = vmatprep.subr.mxu0 0.0
    %411 = vmatpush1.msra.mxu0 %v372
    %412 = vmatprep.subr.mxu0 0.0
    %413 = vmatpush1.msra.mxu0 0.0
    %414 = vmatprep.subr.mxu0 0.0
    %415 = vmatpush1.msra.mxu0 0.0
    %416 = vmatprep.subr.mxu0 0.0
    %417 = vmatpush1.msra.mxu0 0.0
    %418 = vmatprep.subr.mxu0 0.0
    %419 = vmatpush1.msra.mxu0 0.0
    %420 = vmatprep.subr.mxu0 0.0
    %421 = vmatpush1.msra.mxu0 0.0
    %422 = vmatprep.subr.mxu0 0.0
    %423 = vmatpush1.msra.mxu0 0.0
    %424 = vmatprep.subr.mxu0 0.0
    %425 = vmatpush1.msra.mxu0 0.0
    %426 = vmatprep.subr.mxu0 0.0
    %427 = vmatpush1.msra.mxu0 0.0
    %428 = vmatprep.subr.mxu0 0.0
    %429 = vmatpush1.msra.mxu0 0.0
    %430 = vmatprep.subr.mxu0 0.0
    %431 = vmatpush1.msra.mxu0 0.0
    %432 = vmatprep.subr.mxu0 0.0
    %433 = vmatpush1.msra.mxu0 0.0
    %434 = vmatprep.subr.mxu0 0.0
    %435 = vmatpush1.msra.mxu0 0.0
    %436 = vmatprep.subr.mxu0 0.0
    %437 = vmatpush1.msra.mxu0 0.0
    %438 = vmatprep.subr.mxu0 0.0
    %439 = vmatpush1.msra.mxu0 0.0
    %440 = vmatprep.subr.mxu0 0.0
    %441 = vmatpush1.msra.mxu0 0.0
    %442 = vmatprep.subr.mxu0 0.0
    %443 = vmatpush1.msra.mxu0 0.0
    %444 = vmatprep.mubr.f32.mxu0 0.0
    %445 = vmatmul.mubr.f32.gmra.mrb[0].mxu0 %v356
    %v446 = vpop.f32.mrb[0].mxu0
    %v447 = vadd.f32 %v378, %v446
    %v448 = vpop.f32.mrb[0].mxu0
    %449 = vdwg.mxu0
    %v450 = vmul.f32 %v447, 0.17677669
    %vm451 = vcmask 23552
    %v452 = vsel %vm451, %v450, -inf
    %453 = vmax.xlane.f32.xlu0 %v452
    %v454 = vpop.xlane.xlu0 %453
    %v455 = vsub.f32 %v450, %v454
    %v456 = vmul.f32 %v455, 1.442695
    %v457 = vpow.pop %v456
    %v458 = vsel %vm451, %v457, 0.0
    %459 = vadd.xlane.f32.xlu0 %v458
    %v460 = vpop.xlane.xlu0 %459
    %v461 = vrcp.pop %v460
    %v462 = vmul.f32 %v457, %v461
    %463 = vst.msk [vmem:[%s9] sm:$0xff] %vm451, %v462
    %v464 = vld [vmem:[%s0] sm:$0xff]
    %466 = vset.pattern.permute.xlu0 0
    %467 = vperm.xlu0 %466, %v462
    %v468 = vpop.permute.xlu0 %467
    %v470 = vmul.f32 %v464, %v468
    %v471 = vld [vmem:[#allocation2] sm:$0xff]
    %472 = vset.pattern.permute.xlu0 1
    %473 = vperm.xlu0 %472, %v462
    %v474 = vpop.permute.xlu0 %473
    %v476 = vmul.f32 %v471, %v474
    %v477 = vadd.f32 %v470, %v476
    %v478 = vld [vmem:[#allocation5] sm:$0xff]
    %479 = vset.pattern.permute.xlu0 2
    %480 = vperm.xlu0 %479, %v462
    %v481 = vpop.permute.xlu0 %480
    %v483 = vmul.f32 %v478, %v481
    %v484 = vadd.f32 %v477, %v483
    %485 = vst [vmem:[#allocation10] sm:$0xff] %v484
    // Predicated region
    $region54: #{tpu_custom_call.1} parent=1 // pred_check
      _
    $region55: #{tpu_custom_call.1} parent=1 // pred_check_branch
      %487 = sbr.rel (0) target = $region57
    $region56: #{tpu_custom_call.1} parent=1 // pred_region
      _
    $region57: #{tpu_custom_call.1} parent=1 // pred_fallthru
      _
    // Predicated region
    $region58: #{tpu_custom_call.1} parent=1 // pred_check
      _
    $region59: #{tpu_custom_call.1} parent=1 // pred_check_branch
      %489 = sbr.rel (0) target = $region61
    $region60: #{tpu_custom_call.1} parent=1 // pred_region
      %s491 = ssub.s32 128, 128
      %492 = vsyncadd [#allocation4], %s491
      %s494 = sshll.u32 [#allocation10], 4
      %s495 = int_to_ptr.vmem [resolvable:$true] %s494
      %497 = dma.vmem_to_hbm [thread:$0]  %s495, 128, %s10, [#allocation4]
    $region61: #{tpu_custom_call.1} parent=1 // pred_fallthru
      _
    // Predicated region
    $region62: #{tpu_custom_call.1} parent=1 // pred_check
      _
    $region63: #{tpu_custom_call.1} parent=1 // pred_check_branch
      %499 = sbr.rel (0) target = $region65
    $region64: #{tpu_custom_call.1} parent=1 // pred_region
      _
    $region65: #{tpu_custom_call.1} parent=1 // pred_fallthru
      _
    // Predicated region
    $region66: #{tpu_custom_call.1} parent=1 // pred_check
      _
    $region67: #{tpu_custom_call.1} parent=1 // pred_check_branch
      %501 = sbr.rel (0) target = $region69
    $region68: #{tpu_custom_call.1} parent=1 // pred_region
      %502 = dma.done [#allocation4], 128
    $region69: #{tpu_custom_call.1} parent=1 // pred_fallthru
      _
    %503 = vsyncpa [#allocation3], 1
    %504 = vsyncpa [#allocation6], 1
    %505 = vsyncpa [#allocation9], 1
    %506 = vsyncpa [#allocation4], 1

// kernel: tpu_custom_call.1
$region0: #{tpu_custom_call.1}
  #allocation0 [shape = 'u32[]', space=smem, size = 0x4, offset = 0x4, fixed_abs, tag = 'smem constant byte address 0x4 - core index']
  #allocation1 [shape = 'u32[144,128]{1,0:T(1,128)}', space=vmem, size = 0x12000, scoped, tag = 'internal scratch']
  %s0 = inlined_call_operand.vmem [shape: f32[8,128], index: 0, kind: input, shape index: {}]
  %s1 = inlined_call_operand.hbm [shape: f32[8,128], index: 1, kind: input, shape index: {}]
  %s2 = inlined_call_operand.hbm [shape: f32[8,128], index: 2, kind: input, shape index: {}]
  %s3 = inlined_call_operand.vmem [shape: f32[128,128], index: 3, kind: input, shape index: {}]
  %s4 = inlined_call_operand.hbm [shape: f32[128,128], index: 4, kind: input, shape index: {}]
  %s5 = inlined_call_operand.hbm [shape: f32[128,128], index: 5, kind: input, shape index: {}]
  %s6 = inlined_call_operand.vmem [shape: f32[1,128], index: 6, kind: input, shape index: {}]
  %s7 = inlined_call_operand.vmem [shape: f32[128,3], index: 7, kind: input, shape index: {}]
  %s8 = inlined_call_operand.vmem [shape: f32[1,3], index: 8, kind: input, shape index: {}]
  %s9 = inlined_call_operand.vmem [shape: f32[8,3], index: 9, kind: output, shape index: {0}]
  %s10 = inlined_call_operand.hbm [shape: f32[8,128], index: 10, kind: output, shape index: {1}]
  %11 = xla_tuple %s9, %s10
  %s12 = sld [smem:[#allocation0]]
  $region70: #{tpu_custom_call.1} parent=0
    _
  %s14 = ssub.s32 1, %s12
  %s15 = scalar_select 0, %s14, %s12
  $region1: #{tpu_custom_call.1} parent=0
    #allocation2 [shape = 'u8[4096]{0}', space=vmem, size = 0x1000, scoped, tag = 'input window, operand 1, single buffered']
    #allocation3 [shape = 's32[1]{0}', space=sflag, size = 0x4, scoped, tag = 'scoped memory for tpu_custom_call.1']
    #allocation4 [shape = 's32[1]{0}', space=sflag, size = 0x4, scoped, tag = 'scoped memory for tpu_custom_call.1']
    #allocation5 [shape = 'u8[4096]{0}', space=vmem, size = 0x1000, scoped, tag = 'input window, operand 2, single buffered']
    #allocation6 [shape = 's32[1]{0}', space=sflag, size = 0x4, scoped, tag = 'scoped memory for tpu_custom_call.1']
    #allocation7 [shape = 'u8[65536]{0}', space=vmem, size = 0x10000, scoped, tag = 'input window, operand 4, single buffered']
    #allocation8 [shape = 'u8[65536]{0}', space=vmem, size = 0x10000, scoped, tag = 'input window, operand 5, single buffered']
    #allocation9 [shape = 's32[1]{0}', space=sflag, size = 0x4, scoped, tag = 'scoped memory for tpu_custom_call.1']
    #allocation10 [shape = 'u8[4096]{0}', space=vmem, size = 0x1000, scoped, tag = 'output window, operand 1, single buffered']
    %16 = vsyncpa [#allocation3], 0
    %17 = vsyncpa [#allocation6], 0
    %18 = vsyncpa [#allocation9], 0
    %19 = vsyncpa [#allocation4], 0
    // Predicated region
    $region2: #{tpu_custom_call.1} parent=1 // pred_check
      _
    $region3: #{tpu_custom_call.1} parent=1 // pred_check_branch
      %21 = sbr.rel (0) target = $region5
    $region4: #{tpu_custom_call.1} parent=1 // pred_region
      _
    $region5: #{tpu_custom_call.1} parent=1 // pred_fallthru
      _
    // Predicated region
    $region6: #{tpu_custom_call.1} parent=1 // pred_check
      _
    $region7: #{tpu_custom_call.1} parent=1 // pred_check_branch
      %23 = sbr.rel (0) target = $region9
    $region8: #{tpu_custom_call.1} parent=1 // pred_region
      %s25 = ssub.s32 128, 128
      %26 = vsyncadd [#allocation3], %s25
      %s28 = sshll.u32 [#allocation2], 4
      %s29 = int_to_ptr.vmem [resolvable:$true] %s28
      %31 = dma.hbm_to_vmem [thread:$0]  %s1, 128, %s29, [#allocation3]
    $region9: #{tpu_custom_call.1} parent=1 // pred_fallthru
      _
    // Predicated region
    $region10: #{tpu_custom_call.1} parent=1 // pred_check
      _
    $region11: #{tpu_custom_call.1} parent=1 // pred_check_branch
      %33 = sbr.rel (0) target = $region13
    $region12: #{tpu_custom_call.1} parent=1 // pred_region
      %s35 = ssub.s32 128, 128
      %36 = vsyncadd [#allocation6], %s35
      %s38 = sshll.u32 [#allocation5], 4
      %s39 = int_to_ptr.vmem [resolvable:$true] %s38
      %41 = dma.hbm_to_vmem [thread:$0]  %s2, 128, %s39, [#allocation6]
    $region13: #{tpu_custom_call.1} parent=1 // pred_fallthru
      _
    // Predicated region
    $region14: #{tpu_custom_call.1} parent=1 // pred_check
      _
    $region15: #{tpu_custom_call.1} parent=1 // pred_check_branch
      %43 = sbr.rel (0) target = $region17
    $region16: #{tpu_custom_call.1} parent=1 // pred_region
      _
    $region17: #{tpu_custom_call.1} parent=1 // pred_fallthru
      _
    // Predicated region
    $region18: #{tpu_custom_call.1} parent=1 // pred_check
      _
    $region19: #{tpu_custom_call.1} parent=1 // pred_check_branch
      %45 = sbr.rel (0) target = $region21
    $region20: #{tpu_custom_call.1} parent=1 // pred_region
      %s47 = ssub.s32 2048, 2048
      %48 = vsyncadd [#allocation6], %s47
      %s49 = sshll.u32 [#allocation7], 4
      %s50 = int_to_ptr.vmem [resolvable:$true] %s49
      %55 = dma.hbm_to_vmem [thread:$0]  %s4, 2048, %s50, [#allocation6], 128, 128, 8
    $region21: #{tpu_custom_call.1} parent=1 // pred_fallthru
      _
    // Predicated region
    $region22: #{tpu_custom_call.1} parent=1 // pred_check
      _
    $region23: #{tpu_custom_call.1} parent=1 // pred_check_branch
      %57 = sbr.rel (0) target = $region25
    $region24: #{tpu_custom_call.1} parent=1 // pred_region
      %s59 = ssub.s32 2048, 2048
      %60 = vsyncadd [#allocation9], %s59
      %s61 = sshll.u32 [#allocation8], 4
      %s62 = int_to_ptr.vmem [resolvable:$true] %s61
      %67 = dma.hbm_to_vmem [thread:$0]  %s5, 2048, %s62, [#allocation9], 128, 128, 8
    $region25: #{tpu_custom_call.1} parent=1 // pred_fallthru
      _
    // Predicated region
    $region26: #{tpu_custom_call.1} parent=1 // pred_check
      _
    $region27: #{tpu_custom_call.1} parent=1 // pred_check_branch
      %69 = sbr.rel (0) target = $region29
    $region28: #{tpu_custom_call.1} parent=1 // pred_region
      _
    $region29: #{tpu_custom_call.1} parent=1 // pred_fallthru
      _
    // Predicated region
    $region30: #{tpu_custom_call.1} parent=1 // pred_check
      _
    $region31: #{tpu_custom_call.1} parent=1 // pred_check_branch
      %71 = sbr.rel (0) target = $region33
    $region32: #{tpu_custom_call.1} parent=1 // pred_region
      _
    $region33: #{tpu_custom_call.1} parent=1 // pred_fallthru
      _
    // Predicated region
    $region34: #{tpu_custom_call.1} parent=1 // pred_check
      _
    $region35: #{tpu_custom_call.1} parent=1 // pred_check_branch
      %73 = sbr.rel (0) target = $region37
    $region36: #{tpu_custom_call.1} parent=1 // pred_region
      _
    $region37: #{tpu_custom_call.1} parent=1 // pred_fallthru
      _
    // Predicated region
    $region38: #{tpu_custom_call.1} parent=1 // pred_check
      _
    $region39: #{tpu_custom_call.1} parent=1 // pred_check_branch
      %75 = sbr.rel (0) target = $region41
    $region40: #{tpu_custom_call.1} parent=1 // pred_region
      %76 = dma.done [#allocation3], 128
    $region41: #{tpu_custom_call.1} parent=1 // pred_fallthru
      _
    // Predicated region
    $region42: #{tpu_custom_call.1} parent=1 // pred_check
      _
    $region43: #{tpu_custom_call.1} parent=1 // pred_check_branch
      %78 = sbr.rel (0) target = $region45
    $region44: #{tpu_custom_call.1} parent=1 // pred_region
      %79 = dma.done [#allocation6], 128
    $region45: #{tpu_custom_call.1} parent=1 // pred_fallthru
      _
    // Predicated region
    $region46: #{tpu_custom_call.1} parent=1 // pred_check
      _
    $region47: #{tpu_custom_call.1} parent=1 // pred_check_branch
      %81 = sbr.rel (0) target = $region49
    $region48: #{tpu_custom_call.1} parent=1 // pred_region
      %82 = dma.done [#allocation6], 2048
    $region49: #{tpu_custom_call.1} parent=1 // pred_fallthru
      _
    // Predicated region
    $region50: #{tpu_custom_call.1} parent=1 // pred_check
      _
    $region51: #{tpu_custom_call.1} parent=1 // pred_check_branch
      %84 = sbr.rel (0) target = $region53
    $region52: #{tpu_custom_call.1} parent=1 // pred_region
      %85 = dma.done [#allocation9], 2048
    $region53: #{tpu_custom_call.1} parent=1 // pred_fallthru
      _
    %v86 = vld [vmem:[%s0] sm:$0xff]
    %v87 = vld [vmem:[%s3] sm:$0xff]
    %v88 = vld [vmem:[%s3 + $0x8] sm:$0xff]
    %v89 = vld [vmem:[%s3 + $0x10] sm:$0xff]
    %v90 = vld [vmem:[%s3 + $0x18] sm:$0xff]
    %v91 = vld [vmem:[%s3 + $0x20] sm:$0xff]
    %v92 = vld [vmem:[%s3 + $0x28] sm:$0xff]
    %v93 = vld [vmem:[%s3 + $0x30] sm:$0xff]
    %v94 = vld [vmem:[%s3 + $0x38] sm:$0xff]
    %v95 = vld [vmem:[%s3 + $0x40] sm:$0xff]
    %v96 = vld [vmem:[%s3 + $0x48] sm:$0xff]
    %v97 = vld [vmem:[%s3 + $0x50] sm:$0xff]
    %v98 = vld [vmem:[%s3 + $0x58] sm:$0xff]
    %v99 = vld [vmem:[%s3 + $0x60] sm:$0xff]
    %v100 = vld [vmem:[%s3 + $0x68] sm:$0xff]
    %v101 = vld [vmem:[%s3 + $0x70] sm:$0xff]
    %v102 = vld [vmem:[%s3 + $0x78] sm:$0xff]
    %v103 = vld [vmem:[#allocation2] sm:$0xff]
    %v104 = vld [vmem:[#allocation7] sm:$0xff]
    %v105 = vld [vmem:[#allocation7 + $0x8] sm:$0xff]
    %v106 = vld [vmem:[#allocation7 + $0x10] sm:$0xff]
    %v107 = vld [vmem:[#allocation7 + $0x18] sm:$0xff]
    %v108 = vld [vmem:[#allocation7 + $0x20] sm:$0xff]
    %v109 = vld [vmem:[#allocation7 + $0x28] sm:$0xff]
    %v110 = vld [vmem:[#allocation7 + $0x30] sm:$0xff]
    %v111 = vld [vmem:[#allocation7 + $0x38] sm:$0xff]
    %v112 = vld [vmem:[#allocation7 + $0x40] sm:$0xff]
    %v113 = vld [vmem:[#allocation7 + $0x48] sm:$0xff]
    %v114 = vld [vmem:[#allocation7 + $0x50] sm:$0xff]
    %v115 = vld [vmem:[#allocation7 + $0x58] sm:$0xff]
    %v116 = vld [vmem:[#allocation7 + $0x60] sm:$0xff]
    %v117 = vld [vmem:[#allocation7 + $0x68] sm:$0xff]
    %v118 = vld [vmem:[#allocation7 + $0x70] sm:$0xff]
    %v119 = vld [vmem:[#allocation7 + $0x78] sm:$0xff]
    %120 = vmatprep.subr.mxu0 0.0
    %121 = vmatpush1.msra.mxu0 %v104
    %122 = vmatprep.subr.mxu0 0.0
    %123 = vmatpush1.msra.mxu0 %v105
    %124 = vmatprep.subr.mxu0 0.0
    %125 = vmatpush1.msra.mxu0 %v106
    %126 = vmatprep.subr.mxu0 0.0
    %127 = vmatpush1.msra.mxu0 %v107
    %128 = vmatprep.subr.mxu0 0.0
    %129 = vmatpush1.msra.mxu0 %v108
    %130 = vmatprep.subr.mxu0 0.0
    %131 = vmatpush1.msra.mxu0 %v109
    %132 = vmatprep.subr.mxu0 0.0
    %133 = vmatpush1.msra.mxu0 %v110
    %134 = vmatprep.subr.mxu0 0.0
    %135 = vmatpush1.msra.mxu0 %v111
    %136 = vmatprep.subr.mxu0 0.0
    %137 = vmatpush1.msra.mxu0 %v112
    %138 = vmatprep.subr.mxu0 0.0
    %139 = vmatpush1.msra.mxu0 %v113
    %140 = vmatprep.subr.mxu0 0.0
    %141 = vmatpush1.msra.mxu0 %v114
    %142 = vmatprep.subr.mxu0 0.0
    %143 = vmatpush1.msra.mxu0 %v115
    %144 = vmatprep.subr.mxu0 0.0
    %145 = vmatpush1.msra.mxu0 %v116
    %146 = vmatprep.subr.mxu0 0.0
    %147 = vmatpush1.msra.mxu0 %v117
    %148 = vmatprep.subr.mxu0 0.0
    %149 = vmatpush1.msra.mxu0 %v118
    %150 = vmatprep.subr.mxu0 0.0
    %151 = vmatpush1.msra.mxu0 %v119
    %152 = vmatprep.subr.mxu0 0.0
    %153 = vmatpush1.msra.mxu0 0.0
    %154 = vmatprep.subr.mxu0 0.0
    %155 = vmatpush1.msra.mxu0 0.0
    %156 = vmatprep.subr.mxu0 0.0
    %157 = vmatpush1.msra.mxu0 0.0
    %158 = vmatprep.subr.mxu0 0.0
    %159 = vmatpush1.msra.mxu0 0.0
    %160 = vmatprep.subr.mxu0 0.0
    %161 = vmatpush1.msra.mxu0 0.0
    %162 = vmatprep.subr.mxu0 0.0
    %163 = vmatpush1.msra.mxu0 0.0
    %164 = vmatprep.subr.mxu0 0.0
    %165 = vmatpush1.msra.mxu0 0.0
    %166 = vmatprep.subr.mxu0 0.0
    %167 = vmatpush1.msra.mxu0 0.0
    %168 = vmatprep.subr.mxu0 0.0
    %169 = vmatpush1.msra.mxu0 0.0
    %170 = vmatprep.subr.mxu0 0.0
    %171 = vmatpush1.msra.mxu0 0.0
    %172 = vmatprep.subr.mxu0 0.0
    %173 = vmatpush1.msra.mxu0 0.0
    %174 = vmatprep.subr.mxu0 0.0
    %175 = vmatpush1.msra.mxu0 0.0
    %176 = vmatprep.subr.mxu0 0.0
    %177 = vmatpush1.msra.mxu0 0.0
    %178 = vmatprep.subr.mxu0 0.0
    %179 = vmatpush1.msra.mxu0 0.0
    %180 = vmatprep.subr.mxu0 0.0
    %181 = vmatpush1.msra.mxu0 0.0
    %182 = vmatprep.subr.mxu0 0.0
    %183 = vmatpush1.msra.mxu0 0.0
    %184 = vmatprep.mubr.f32.mxu0 0.0
    %185 = vmatmul.mubr.f32.gmra.mrb[0].mxu0 %v103
    %v186 = vpop.f32.mrb[0].mxu0
    %v187 = vadd.f32 0.0, %v186
    %v188 = vpop.f32.mrb[0].mxu0
    %189 = vdwg.mxu0
    %190 = vmatprep.subr.mxu0 0.0
    %191 = vmatpush1.msra.mxu0 %v87
    %192 = vmatprep.subr.mxu0 0.0
    %193 = vmatpush1.msra.mxu0 %v88
    %194 = vmatprep.subr.mxu0 0.0
    %195 = vmatpush1.msra.mxu0 %v89
    %196 = vmatprep.subr.mxu0 0.0
    %197 = vmatpush1.msra.mxu0 %v90
    %198 = vmatprep.subr.mxu0 0.0
    %199 = vmatpush1.msra.mxu0 %v91
    %200 = vmatprep.subr.mxu0 0.0
    %201 = vmatpush1.msra.mxu0 %v92
    %202 = vmatprep.subr.mxu0 0.0
    %203 = vmatpush1.msra.mxu0 %v93
    %204 = vmatprep.subr.mxu0 0.0
    %205 = vmatpush1.msra.mxu0 %v94
    %206 = vmatprep.subr.mxu0 0.0
    %207 = vmatpush1.msra.mxu0 %v95
    %208 = vmatprep.subr.mxu0 0.0
    %209 = vmatpush1.msra.mxu0 %v96
    %210 = vmatprep.subr.mxu0 0.0
    %211 = vmatpush1.msra.mxu0 %v97
    %212 = vmatprep.subr.mxu0 0.0
    %213 = vmatpush1.msra.mxu0 %v98
    %214 = vmatprep.subr.mxu0 0.0
    %215 = vmatpush1.msra.mxu0 %v99
    %216 = vmatprep.subr.mxu0 0.0
    %217 = vmatpush1.msra.mxu0 %v100
    %218 = vmatprep.subr.mxu0 0.0
    %219 = vmatpush1.msra.mxu0 %v101
    %220 = vmatprep.subr.mxu0 0.0
    %221 = vmatpush1.msra.mxu0 %v102
    %222 = vmatprep.subr.mxu0 0.0
    %223 = vmatpush1.msra.mxu0 0.0
    %224 = vmatprep.subr.mxu0 0.0
    %225 = vmatpush1.msra.mxu0 0.0
    %226 = vmatprep.subr.mxu0 0.0
    %227 = vmatpush1.msra.mxu0 0.0
    %228 = vmatprep.subr.mxu0 0.0
    %229 = vmatpush1.msra.mxu0 0.0
    %230 = vmatprep.subr.mxu0 0.0
    %231 = vmatpush1.msra.mxu0 0.0
    %232 = vmatprep.subr.mxu0 0.0
    %233 = vmatpush1.msra.mxu0 0.0
    %234 = vmatprep.subr.mxu0 0.0
    %235 = vmatpush1.msra.mxu0 0.0
    %236 = vmatprep.subr.mxu0 0.0
    %237 = vmatpush1.msra.mxu0 0.0
    %238 = vmatprep.subr.mxu0 0.0
    %239 = vmatpush1.msra.mxu0 0.0
    %240 = vmatprep.subr.mxu0 0.0
    %241 = vmatpush1.msra.mxu0 0.0
    %242 = vmatprep.subr.mxu0 0.0
    %243 = vmatpush1.msra.mxu0 0.0
    %244 = vmatprep.subr.mxu0 0.0
    %245 = vmatpush1.msra.mxu0 0.0
    %246 = vmatprep.subr.mxu0 0.0
    %247 = vmatpush1.msra.mxu0 0.0
    %248 = vmatprep.subr.mxu0 0.0
    %249 = vmatpush1.msra.mxu0 0.0
    %250 = vmatprep.subr.mxu0 0.0
    %251 = vmatpush1.msra.mxu0 0.0
    %252 = vmatprep.subr.mxu0 0.0
    %253 = vmatpush1.msra.mxu0 0.0
    %254 = vmatprep.mubr.f32.mxu0 0.0
    %255 = vmatmul.mubr.f32.gmra.mrb[0].mxu0 %v86
    %v256 = vpop.f32.mrb[0].mxu0
    %v257 = vadd.f32 %v187, %v256
    %v258 = vpop.f32.mrb[0].mxu0
    %259 = vdwg.mxu0
    %v260 = vld [vmem:[#allocation5] sm:$0xff]
    %v261 = vld [vmem:[#allocation8] sm:$0xff]
    %v262 = vld [vmem:[#allocation8 + $0x8] sm:$0xff]
    %v263 = vld [vmem:[#allocation8 + $0x10] sm:$0xff]
    %v264 = vld [vmem:[#allocation8 + $0x18] sm:$0xff]
    %v265 = vld [vmem:[#allocation8 + $0x20] sm:$0xff]
    %v266 = vld [vmem:[#allocation8 + $0x28] sm:$0xff]
    %v267 = vld [vmem:[#allocation8 + $0x30] sm:$0xff]
    %v268 = vld [vmem:[#allocation8 + $0x38] sm:$0xff]
    %v269 = vld [vmem:[#allocation8 + $0x40] sm:$0xff]
    %v270 = vld [vmem:[#allocation8 + $0x48] sm:$0xff]
    %v271 = vld [vmem:[#allocation8 + $0x50] sm:$0xff]
    %v272 = vld [vmem:[#allocation8 + $0x58] sm:$0xff]
    %v273 = vld [vmem:[#allocation8 + $0x60] sm:$0xff]
    %v274 = vld [vmem:[#allocation8 + $0x68] sm:$0xff]
    %v275 = vld [vmem:[#allocation8 + $0x70] sm:$0xff]
    %v276 = vld [vmem:[#allocation8 + $0x78] sm:$0xff]
    %277 = vmatprep.subr.mxu0 0.0
    %278 = vmatpush1.msra.mxu0 %v261
    %279 = vmatprep.subr.mxu0 0.0
    %280 = vmatpush1.msra.mxu0 %v262
    %281 = vmatprep.subr.mxu0 0.0
    %282 = vmatpush1.msra.mxu0 %v263
    %283 = vmatprep.subr.mxu0 0.0
    %284 = vmatpush1.msra.mxu0 %v264
    %285 = vmatprep.subr.mxu0 0.0
    %286 = vmatpush1.msra.mxu0 %v265
    %287 = vmatprep.subr.mxu0 0.0
    %288 = vmatpush1.msra.mxu0 %v266
    %289 = vmatprep.subr.mxu0 0.0
    %290 = vmatpush1.msra.mxu0 %v267
    %291 = vmatprep.subr.mxu0 0.0
    %292 = vmatpush1.msra.mxu0 %v268
    %293 = vmatprep.subr.mxu0 0.0
    %294 = vmatpush1.msra.mxu0 %v269
    %295 = vmatprep.subr.mxu0 0.0
    %296 = vmatpush1.msra.mxu0 %v270
    %297 = vmatprep.subr.mxu0 0.0
    %298 = vmatpush1.msra.mxu0 %v271
    %299 = vmatprep.subr.mxu0 0.0
    %300 = vmatpush1.msra.mxu0 %v272
    %301 = vmatprep.subr.mxu0 0.0
    %302 = vmatpush1.msra.mxu0 %v273
    %303 = vmatprep.subr.mxu0 0.0
    %304 = vmatpush1.msra.mxu0 %v274
    %305 = vmatprep.subr.mxu0 0.0
    %306 = vmatpush1.msra.mxu0 %v275
    %307 = vmatprep.subr.mxu0 0.0
    %308 = vmatpush1.msra.mxu0 %v276
    %309 = vmatprep.subr.mxu0 0.0
    %310 = vmatpush1.msra.mxu0 0.0
    %311 = vmatprep.subr.mxu0 0.0
    %312 = vmatpush1.msra.mxu0 0.0
    %313 = vmatprep.subr.mxu0 0.0
    %314 = vmatpush1.msra.mxu0 0.0
    %315 = vmatprep.subr.mxu0 0.0
    %316 = vmatpush1.msra.mxu0 0.0
    %317 = vmatprep.subr.mxu0 0.0
    %318 = vmatpush1.msra.mxu0 0.0
    %319 = vmatprep.subr.mxu0 0.0
    %320 = vmatpush1.msra.mxu0 0.0
    %321 = vmatprep.subr.mxu0 0.0
    %322 = vmatpush1.msra.mxu0 0.0
    %323 = vmatprep.subr.mxu0 0.0
    %324 = vmatpush1.msra.mxu0 0.0
    %325 = vmatprep.subr.mxu0 0.0
    %326 = vmatpush1.msra.mxu0 0.0
    %327 = vmatprep.subr.mxu0 0.0
    %328 = vmatpush1.msra.mxu0 0.0
    %329 = vmatprep.subr.mxu0 0.0
    %330 = vmatpush1.msra.mxu0 0.0
    %331 = vmatprep.subr.mxu0 0.0
    %332 = vmatpush1.msra.mxu0 0.0
    %333 = vmatprep.subr.mxu0 0.0
    %334 = vmatpush1.msra.mxu0 0.0
    %335 = vmatprep.subr.mxu0 0.0
    %336 = vmatpush1.msra.mxu0 0.0
    %337 = vmatprep.subr.mxu0 0.0
    %338 = vmatpush1.msra.mxu0 0.0
    %339 = vmatprep.subr.mxu0 0.0
    %340 = vmatpush1.msra.mxu0 0.0
    %341 = vmatprep.mubr.f32.mxu0 0.0
    %342 = vmatmul.mubr.f32.gmra.mrb[0].mxu0 %v260
    %v343 = vpop.f32.mrb[0].mxu0
    %v344 = vadd.f32 0.0, %v343
    %v345 = vpop.f32.mrb[0].mxu0
    %346 = vdwg.mxu0
    %v347 = vadd.f32 %v257, %v344
    %v348 = vld [vmem:[%s6] sm:$0x1]
    %v350 = vlaneseq
    %v351 = vshrl.u32 %v350, 7
    %v352 = vsub.s32 0, %v351
    %v353 = vrot.slane %v348, %v352
    %v355 = vadd.f32 %v347, %v353
    %v356 = vmax.f32 %v355, 0.0
    %v357 = vld [vmem:[%s7] sm:$0xff]
    %v358 = vld [vmem:[%s7 + $0x8] sm:$0xff]
    %v359 = vld [vmem:[%s7 + $0x10] sm:$0xff]
    %v360 = vld [vmem:[%s7 + $0x18] sm:$0xff]
    %v361 = vld [vmem:[%s7 + $0x20] sm:$0xff]
    %v362 = vld [vmem:[%s7 + $0x28] sm:$0xff]
    %v363 = vld [vmem:[%s7 + $0x30] sm:$0xff]
    %v364 = vld [vmem:[%s7 + $0x38] sm:$0xff]
    %v365 = vld [vmem:[%s7 + $0x40] sm:$0xff]
    %v366 = vld [vmem:[%s7 + $0x48] sm:$0xff]
    %v367 = vld [vmem:[%s7 + $0x50] sm:$0xff]
    %v368 = vld [vmem:[%s7 + $0x58] sm:$0xff]
    %v369 = vld [vmem:[%s7 + $0x60] sm:$0xff]
    %v370 = vld [vmem:[%s7 + $0x68] sm:$0xff]
    %v371 = vld [vmem:[%s7 + $0x70] sm:$0xff]
    %v372 = vld [vmem:[%s7 + $0x78] sm:$0xff]
    %v373 = vld [vmem:[%s8] sm:$0x1]
    %v375 = vlaneseq
    %v376 = vshrl.u32 %v375, 7
    %v377 = vsub.s32 0, %v376
    %v378 = vrot.slane %v373, %v377
    %380 = vmatprep.subr.mxu0 0.0
    %381 = vmatpush1.msra.mxu0 %v357
    %382 = vmatprep.subr.mxu0 0.0
    %383 = vmatpush1.msra.mxu0 %v358
    %384 = vmatprep.subr.mxu0 0.0
    %385 = vmatpush1.msra.mxu0 %v359
    %386 = vmatprep.subr.mxu0 0.0
    %387 = vmatpush1.msra.mxu0 %v360
    %388 = vmatprep.subr.mxu0 0.0
    %389 = vmatpush1.msra.mxu0 %v361
    %390 = vmatprep.subr.mxu0 0.0
    %391 = vmatpush1.msra.mxu0 %v362
    %392 = vmatprep.subr.mxu0 0.0
    %393 = vmatpush1.msra.mxu0 %v363
    %394 = vmatprep.subr.mxu0 0.0
    %395 = vmatpush1.msra.mxu0 %v364
    %396 = vmatprep.subr.mxu0 0.0
    %397 = vmatpush1.msra.mxu0 %v365
    %398 = vmatprep.subr.mxu0 0.0
    %399 = vmatpush1.msra.mxu0 %v366
    %400 = vmatprep.subr.mxu0 0.0
    %401 = vmatpush1.msra.mxu0 %v367
    %402 = vmatprep.subr.mxu0 0.0
    %403 = vmatpush1.msra.mxu0 %v368
    %404 = vmatprep.subr.mxu0 0.0
    %405 = vmatpush1.msra.mxu0 %v369
    %406 = vmatprep.subr.mxu0 0.0
    %407 = vmatpush1.msra.mxu0 %v370
    %408 = vmatprep.subr.mxu0 0.0
    %409 = vmatpush1.msra.mxu0 %v371
    %410 = vmatprep.subr.mxu0 0.0
    %411 = vmatpush1.msra.mxu0 %v372
    %412 = vmatprep.subr.mxu0 0.0
    %413 = vmatpush1.msra.mxu0 0.0
    %414 = vmatprep.subr.mxu0 0.0
    %415 = vmatpush1.msra.mxu0 0.0
    %416 = vmatprep.subr.mxu0 0.0
    %417 = vmatpush1.msra.mxu0 0.0
    %418 = vmatprep.subr.mxu0 0.0
    %419 = vmatpush1.msra.mxu0 0.0
    %420 = vmatprep.subr.mxu0 0.0
    %421 = vmatpush1.msra.mxu0 0.0
    %422 = vmatprep.subr.mxu0 0.0
    %423 = vmatpush1.msra.mxu0 0.0
    %424 = vmatprep.subr.mxu0 0.0
    %425 = vmatpush1.msra.mxu0 0.0
    %426 = vmatprep.subr.mxu0 0.0
    %427 = vmatpush1.msra.mxu0 0.0
    %428 = vmatprep.subr.mxu0 0.0
    %429 = vmatpush1.msra.mxu0 0.0
    %430 = vmatprep.subr.mxu0 0.0
    %431 = vmatpush1.msra.mxu0 0.0
    %432 = vmatprep.subr.mxu0 0.0
    %433 = vmatpush1.msra.mxu0 0.0
    %434 = vmatprep.subr.mxu0 0.0
    %435 = vmatpush1.msra.mxu0 0.0
    %436 = vmatprep.subr.mxu0 0.0
    %437 = vmatpush1.msra.mxu0 0.0
    %438 = vmatprep.subr.mxu0 0.0
    %439 = vmatpush1.msra.mxu0 0.0
    %440 = vmatprep.subr.mxu0 0.0
    %441 = vmatpush1.msra.mxu0 0.0
    %442 = vmatprep.subr.mxu0 0.0
    %443 = vmatpush1.msra.mxu0 0.0
    %444 = vmatprep.mubr.f32.mxu0 0.0
    %445 = vmatmul.mubr.f32.gmra.mrb[0].mxu0 %v356
    %v446 = vpop.f32.mrb[0].mxu0
    %v447 = vadd.f32 %v378, %v446
    %v448 = vpop.f32.mrb[0].mxu0
    %449 = vdwg.mxu0
    %v450 = vmul.f32 %v447, 0.17677669
    %vm451 = vcmask 23552
    %v452 = vsel %vm451, %v450, -inf
    %453 = vmax.xlane.f32.xlu0 %v452
    %v454 = vpop.xlane.xlu0 %453
    %v455 = vsub.f32 %v450, %v454
    %v456 = vmul.f32 %v455, 1.442695
    %v457 = vpow.pop %v456
    %v458 = vsel %vm451, %v457, 0.0
    %459 = vadd.xlane.f32.xlu0 %v458
    %v460 = vpop.xlane.xlu0 %459
    %v461 = vrcp.pop %v460
    %v462 = vmul.f32 %v457, %v461
    %463 = vst.msk [vmem:[%s9] sm:$0xff] %vm451, %v462
    %v464 = vld [vmem:[%s0] sm:$0xff]
    %466 = vset.pattern.permute.xlu0 0
    %467 = vperm.xlu0 %466, %v462
    %v468 = vpop.permute.xlu0 %467
    %v470 = vmul.f32 %v464, %v468
    %v471 = vld [vmem:[#allocation2] sm:$0xff]
    %472 = vset.pattern.permute.xlu0 1
    %473 = vperm.xlu0 %472, %v462
    %v474 = vpop.permute.xlu0 %473
    %v476 = vmul.f32 %v471, %v474
    %v477 = vadd.f32 %v470, %v476
    %v478 = vld [vmem:[#allocation5] sm:$0xff]
    %479 = vset.pattern.permute.xlu0 2
    %480 = vperm.xlu0 %479, %v462
    %v481 = vpop.permute.xlu0 %480
    %v483 = vmul.f32 %v478, %v481
    %v484 = vadd.f32 %v477, %v483
    %485 = vst [vmem:[#allocation10] sm:$0xff] %v484
    // Predicated region
    $region54: #{tpu_custom_call.1} parent=1 // pred_check
      _
    $region55: #{tpu_custom_call.1} parent=1 // pred_check_branch
      %487 = sbr.rel (0) target = $region57
    $region56: #{tpu_custom_call.1} parent=1 // pred_region
      _
    $region57: #{tpu_custom_call.1} parent=1 // pred_fallthru
      _
    // Predicated region
    $region58: #{tpu_custom_call.1} parent=1 // pred_check
      _
    $region59: #{tpu_custom_call.1} parent=1 // pred_check_branch
      %489 = sbr.rel (0) target = $region61
    $region60: #{tpu_custom_call.1} parent=1 // pred_region
      %s491 = ssub.s32 128, 128
      %492 = vsyncadd [#allocation4], %s491
      %s494 = sshll.u32 [#allocation10], 4
      %s495 = int_to_ptr.vmem [resolvable:$true] %s494
      %497 = dma.vmem_to_hbm [thread:$0]  %s495, 128, %s10, [#allocation4]
    $region61: #{tpu_custom_call.1} parent=1 // pred_fallthru
      _
    // Predicated region
    $region62: #{tpu_custom_call.1} parent=1 // pred_check
      _
    $region63: #{tpu_custom_call.1} parent=1 // pred_check_branch
      %499 = sbr.rel (0) target = $region65
    $region64: #{tpu_custom_call.1} parent=1 // pred_region
      _
    $region65: #{tpu_custom_call.1} parent=1 // pred_fallthru
      _
    // Predicated region
    $region66: #{tpu_custom_call.1} parent=1 // pred_check
      _
    $region67: #{tpu_custom_call.1} parent=1 // pred_check_branch
      %501 = sbr.rel (0) target = $region69
    $region68: #{tpu_custom_call.1} parent=1 // pred_region
      %502 = dma.done [#allocation4], 128
    $region69: #{tpu_custom_call.1} parent=1 // pred_fallthru
      _
    %503 = vsyncpa [#allocation3], 1
    %504 = vsyncpa [#allocation6], 1
    %505 = vsyncpa [#allocation9], 1
    %506 = vsyncpa [#allocation4], 1

</llo_original>
